<compile_context>
chip_gen: v5e
topology: v5e:2x2
jax: 0.10.0
libtpu: 0.0.40
codegen_flags: <defaults>
</compile_context>

<pallas_src>
import functools

import jax
import jax.numpy as jnp
from jax.experimental import pallas as pl
from jax.experimental.pallas import tpu as pltpu

EP = 1e-8                       # epsilon of Binary_dice_loss
NEG_INF = -1e30                 # bias of padded classes -> softmax prob ~ 0
VMEM_LIMIT = 48 * 1024 * 1024   # v7x-safe scoped-VMEM budget


def _round_up(x, m):
    return (x + m - 1) // m * m


def _choose_tile_v(V, cp, kp, budget_bytes=4 << 20):
    """Largest multiple-of-128 divisor of V whose double-buffered f32 blocks
    (x, d, pred in; p_hat out) fit the per-step byte budget."""
    assert V % 128 == 0, "flattened spatial volume must be a multiple of 128"
    per_lane = 2 * (2 * cp + 2 * kp) * 4        # 2 buffers x 4 streams x f32
    t = min(V, max(128, (budget_bytes // per_lane) // 128 * 128))
    while V % t:
        t -= 128
    return t


# -----------------------------------------------------------------------------
# Kernel 1: clean forward  pred = softmax(W_aug @ x, channel axis)
# -----------------------------------------------------------------------------
def _pred_softmax_kernel(x_ref, w_ref, p_ref):
    logits = jnp.dot(w_ref[...], x_ref[0],
                     preferred_element_type=jnp.float32)          # (KP, T)
    m = jnp.max(logits, axis=0, keepdims=True)
    e = jnp.exp(logits - m)
    p_ref[0] = e * pl.reciprocal(jnp.sum(e, axis=0, keepdims=True), approx=True)


def model_softmax_pred(x, w, tile_v):
    N, CP, V = x.shape
    KP = w.shape[0]
    return pl.pallas_call(
        _pred_softmax_kernel,
        out_shape=jax.ShapeDtypeStruct((N, KP, V), jnp.float32),
        grid_spec=pltpu.PrefetchScalarGridSpec(
            num_scalar_prefetch=0,
            grid=(N, V // tile_v),
            in_specs=[pl.BlockSpec((1, CP, tile_v), lambda n, v: (n, 0, v)),
                      pl.BlockSpec((KP, CP), lambda n, v: (0, 0))],
            out_specs=pl.BlockSpec((1, KP, tile_v), lambda n, v: (n, 0, v))),
        compiler_params=pltpu.CompilerParams(
            dimension_semantics=("parallel", "parallel"),
            vmem_limit_bytes=VMEM_LIMIT),
    )(x, w)


# -----------------------------------------------------------------------------
# Kernel 2: fused perturbed forward + channel softmax + dice partial sums
#   p_hat = softmax(W_aug @ (x + scale_n * d))
#   per-sample sums: [sum(p*t), sum(p), sum(t)] accumulated over the V grid axis
# -----------------------------------------------------------------------------
def _fwd_dice_kernel(scale_ref, x_ref, d_ref, w_ref, t_ref, *refs, write_phat):
    if write_phat:
        p_ref, s_ref, acc_ref = refs
    else:
        p_ref = None
        s_ref, acc_ref = refs

    n = pl.program_id(0)
    v = pl.program_id(1)

    @pl.when(v == 0)
    def _init():
        acc_ref[0] = 0.0
        acc_ref[1] = 0.0
        acc_ref[2] = 0.0

    xin = x_ref[0] + scale_ref[n] * d_ref[0]                      # (CP, T)
    logits = jnp.dot(w_ref[...], xin,
                     preferred_element_type=jnp.float32)          # (KP, T)
    m = jnp.max(logits, axis=0, keepdims=True)
    e = jnp.exp(logits - m)
    p = e * pl.reciprocal(jnp.sum(e, axis=0, keepdims=True), approx=True)
    if write_phat:
        p_ref[0] = p

    t = t_ref[0]
    acc_ref[0] += jnp.sum(p * t)
    acc_ref[1] += jnp.sum(p)
    acc_ref[2] += jnp.sum(t)

    @pl.when(v == pl.num_programs(1) - 1)
    def _fin():
        lane = jax.lax.broadcasted_iota(jnp.int32, (8, 128), 1)
        s_ref[0] = jnp.where(lane == 0, acc_ref[0],
                     jnp.where(lane == 1, acc_ref[1],
                       jnp.where(lane == 2, acc_ref[2], 0.0)))


def model_softmax_dice(x, d, w, pred, scale, tile_v, *, write_phat=True):
    N, CP, V = x.shape
    KP = w.shape[0]
    kern = functools.partial(_fwd_dice_kernel, write_phat=write_phat)
    if write_phat:
        out_shape = (jax.ShapeDtypeStruct((N, KP, V), jnp.float32),
                     jax.ShapeDtypeStruct((N, 8, 128), jnp.float32))
        out_specs = (pl.BlockSpec((1, KP, tile_v), lambda n, v: (n, 0, v)),
                     pl.BlockSpec((1, 8, 128), lambda n, v: (n, 0, 0)))
    else:
        out_shape = jax.ShapeDtypeStruct((N, 8, 128), jnp.float32)
        out_specs = pl.BlockSpec((1, 8, 128), lambda n, v: (n, 0, 0))

    out = pl.pallas_call(
        kern,
        out_shape=out_shape,
        grid_spec=pltpu.PrefetchScalarGridSpec(
            num_scalar_prefetch=0,
            grid=(N, V // tile_v),
            in_specs=[pl.BlockSpec(memory_space=pltpu.MemorySpace.SMEM),  # scale (N,)
                      pl.BlockSpec((1, CP, tile_v), lambda n, v: (n, 0, v)),
                      pl.BlockSpec((1, CP, tile_v), lambda n, v: (n, 0, v)),
                      pl.BlockSpec((KP, CP), lambda n, v: (0, 0)),
                      pl.BlockSpec((1, KP, tile_v), lambda n, v: (n, 0, v))],
            out_specs=out_specs,
            scratch_shapes=[pltpu.SMEM((3,), jnp.float32)]),
        compiler_params=pltpu.CompilerParams(
            dimension_semantics=("parallel", "arbitrary"),
            vmem_limit_bytes=VMEM_LIMIT),
    )(scale, x, d, w, pred)
    if write_phat:
        return out                    # (p_hat, sums)
    return None, out


# -----------------------------------------------------------------------------
# Kernel 3: analytic backward of dice(softmax(conv(x + xi*d)), pred) w.r.t. d,
#           fused with per-sample sum(grad^2) (feeds the folded l2-normalize).
# -----------------------------------------------------------------------------
def _vat_grad_kernel(iu_ref, p_ref, t_ref, wt_ref, g_ref, q_ref, acc_ref, *, xi):
    v = pl.program_id(1)

    @pl.when(v == 0)
    def _init():
        acc_ref[0] = 0.0

    inter = iu_ref[0]                     # 2*sum(p*t) + ep
    inv_u = 1.0 / iu_ref[1]               # 1 / (sum(p)+sum(t)+ep)
    p = p_ref[0]                          # (KP, T) softmax output p_hat
    t = t_ref[0]                          # (KP, T) target pred
    # dL/dp for L = 1 - inter/union
    gp = (inter * inv_u * inv_u) - (2.0 * inv_u) * t
    # softmax backward along channel axis
    dot = jnp.sum(gp * p, axis=0, keepdims=True)                  # (1, T)
    dlogits = p * (gp - dot)                                      # (KP, T)
    # conv (channel matmul) backward to the input; xi = chain rule for x + xi*d
    dx = xi * jnp.dot(wt_ref[...], dlogits,
                      preferred_element_type=jnp.float32)         # (CP, T)
    g_ref[0] = dx
    acc_ref[0] += jnp.sum(dx * dx)

    @pl.when(v == pl.num_programs(1) - 1)
    def _fin():
        lane = jax.lax.broadcasted_iota(jnp.int32, (8, 128), 1)
        q_ref[0] = jnp.where(lane == 0, acc_ref[0], 0.0)


def vat_grad(iu, p_hat, pred, wt, xi, tile_v):
    N, KP, V = p_hat.shape
    CP = wt.shape[0]
    kern = functools.partial(_vat_grad_kernel, xi=float(xi))
    return pl.pallas_call(
        kern,
        out_shape=(jax.ShapeDtypeStruct((N, CP, V), jnp.float32),
                   jax.ShapeDtypeStruct((N, 8, 128), jnp.float32)),
        grid_spec=pltpu.PrefetchScalarGridSpec(
            num_scalar_prefetch=0,
            grid=(N, V // tile_v),
            in_specs=[pl.BlockSpec(memory_space=pltpu.MemorySpace.SMEM),  # [inter, union]
                      pl.BlockSpec((1, KP, tile_v), lambda n, v: (n, 0, v)),
                      pl.BlockSpec((1, KP, tile_v), lambda n, v: (n, 0, v)),
                      pl.BlockSpec((CP, KP), lambda n, v: (0, 0))],
            out_specs=(pl.BlockSpec((1, CP, tile_v), lambda n, v: (n, 0, v)),
                       pl.BlockSpec((1, 8, 128), lambda n, v: (n, 0, 0))),
            scratch_shapes=[pltpu.SMEM((1,), jnp.float32)]),
        compiler_params=pltpu.CompilerParams(
            dimension_semantics=("parallel", "arbitrary"),
            vmem_limit_bytes=VMEM_LIMIT),
    )(iu, p_hat, pred, wt)


# -----------------------------------------------------------------------------
# VAT3d.forward
# -----------------------------------------------------------------------------
def _dice_from_sums(sums):
    inter = 2.0 * jnp.sum(sums[:, 0, 0]) + EP
    union = jnp.sum(sums[:, 0, 1]) + jnp.sum(sums[:, 0, 2]) + EP
    return inter, union


def vat3d_loss(x, w, b, key, xi=10.0, epi=6.0, ip=1):
    """x: (N, C, V); w: (K, C); b: (K,).  Returns scalar lds."""
    N, C, V = x.shape
    K = w.shape[0]

    # --- sublane packing + bias folding (one-time layout glue) --------------
    # Pad channels/classes so every block fills the 8-sublane tile; reserve one
    # padded input channel as a constant-1 "bias channel" so the conv bias rides
    # the matmul.  Padded output classes get bias -1e30 -> softmax prob ~ 0, so
    # dice sums and gradients are unaffected.
    CP = _round_up(C + 1, 8)
    KP = _round_up(K, 8)
    bias_ch = C

    xp = (jnp.zeros((N, CP, V), jnp.float32)
          .at[:, :C, :].set(x)
          .at[:, bias_ch, :].set(1.0))
    w_aug = (jnp.zeros((KP, CP), jnp.float32)
             .at[:K, :C].set(w)
             .at[:K, bias_ch].set(b)
             .at[K:, bias_ch].set(NEG_INF))
    # backward weights: no bias row, no padded rows -> grad of padded channels = 0
    wt = jnp.zeros((CP, KP), jnp.float32).at[:C, :K].set(w.T)

    tile_v = _choose_tile_v(V, CP, KP)

    # pred = softmax(model(x), channel axis)   (no grad, no perturbation stream)
    pred = model_softmax_pred(xp, w_aug, tile_v)

    # d = rand(x.shape) - 0.5 ;  its l2-normalization is folded into the
    # per-sample `scale` passed to the forward kernel (scale = xi/(||d||+eps)).
    d = jax.random.uniform(key, (N, C, V), dtype=jnp.float32) - 0.5
    d = jnp.pad(d, ((0, 0), (0, CP - C), (0, 0)))
    norm = jnp.sqrt(jnp.sum(d * d, axis=(1, 2)))      # (N,) one-time glue reduce

    for _ in range(ip):
        scale = xi / (norm + 1e-8)
        p_hat, sums = model_softmax_dice(xp, d, w_aug, pred, scale, tile_v)
        inter, union = _dice_from_sums(sums)
        iu = jnp.stack([inter, union]).astype(jnp.float32)
        d, gsq = vat_grad(iu, p_hat, pred, wt, xi, tile_v)   # d <- d.grad
        norm = jnp.sqrt(gsq[:, 0, 0])                        # per-sample ||d.grad||

    # lds = dice(softmax(model(x + epi * d/(||d||+eps))), pred)
    scale = epi / (norm + 1e-8)
    _, sums = model_softmax_dice(xp, d, w_aug, pred, scale, tile_v,
                                 write_phat=False)           # skip the p_hat write
    inter, union = _dice_from_sums(sums)
    lds = 1.0 - inter / union
    return lds


if __name__ == "__main__":
    # Small 3-D shapes: batch=2, in-channels=4, classes=4, D,H,W = 4,8,16
    N, C, K = 2, 4, 4
    D, H, W = 4, 8, 16
    V = D * H * W          # 512, multiple of 128 -> lane-dense blocks

    key = jax.random.PRNGKey(0)
    kx, kd, kw = jax.random.split(key, 3)

    # PyTorch input would be (N, C, D, H, W); flatten spatial -> (N, C, V)
    x = jax.random.normal(kx, (N, C, D, H, W), dtype=jnp.float32).reshape(N, C, V)

    # Deterministic synthetic model parameters (1x1x1 conv C -> K)
    w = 0.1 * jax.random.normal(kw, (K, C), dtype=jnp.float32)
    b = 0.01 * jnp.arange(K, dtype=jnp.float32)

    loss_fn = jax.jit(functools.partial(vat3d_loss, xi=10.0, epi=6.0, ip=1))
    lds = loss_fn(x, w, b, kd)
    lds = jax.block_until_ready(lds)
    assert jnp.isfinite(lds), f"non-finite loss: {lds}"
    print("KERNEL_OK")
</pallas_src>

<mosaic_0001>
module attributes {stable_mosaic.version = 11 : i64} {
  func.func @_pred_softmax_kernel(%arg0: i32, %arg1: i32, %arg2: memref<1x8x512xf32, #tpu.memory_space<vmem>>, %arg3: memref<8x8xf32, #tpu.memory_space<vmem>>, %arg4: memref<1x8x512xf32, #tpu.memory_space<vmem>>) attributes {dimension_semantics = [#tpu.dimension_semantics<parallel>, #tpu.dimension_semantics<parallel>], iteration_bounds = array<i64: 2, 1>, scalar_prefetch = 0 : i64, scratch_operands = 0 : i64, tpu.core_type = #tpu.core_type<tc>, window_params = [{transform_indices = @transform_0, window_bounds = array<i64: 1, 8, 512>}, {pipeline_mode = #tpu.pipeline_mode<synchronous>, transform_indices = @transform_1, window_bounds = array<i64: 8, 8>}, {transform_indices = @transform_2, window_bounds = array<i64: 1, 8, 512>}]} {
    %c0 = arith.constant 0 : index
    %c0_0 = arith.constant 0 : index
    %0 = vector.load %arg3[%c0, %c0_0] : memref<8x8xf32, #tpu.memory_space<vmem>>, vector<8x8xf32>
    %c0_1 = arith.constant 0 : index
    %c0_2 = arith.constant 0 : index
    %c0_3 = arith.constant 0 : index
    %1 = vector.load %arg2[%c0_1, %c0_2, %c0_3] : memref<1x8x512xf32, #tpu.memory_space<vmem>>, vector<1x8x512xf32>
    %2 = vector.shape_cast %1 : vector<1x8x512xf32> to vector<8x512xf32>
    %cst = arith.constant dense<0.000000e+00> : vector<8x512xf32>
    %3 = tpu.matmul %0, %2, %cst {dimension_numbers = #tpu.dot_dimension_numbers<[1], [0], [0], [1], [0, 0, 1, 1], [], []>} : vector<8x8xf32>, vector<8x512xf32>, vector<8x512xf32> -> vector<8x512xf32>
    %cst_4 = arith.constant dense<0xFF800000> : vector<512xf32>
    %4 = vector.multi_reduction <maximumf>, %3, %cst_4 [0] : vector<8x512xf32> to vector<512xf32>
    %5 = vector.shape_cast %4 : vector<512xf32> to vector<1x512xf32>
    %6 = vector.broadcast %5 : vector<1x512xf32> to vector<8x512xf32>
    %7 = arith.subf %3, %6 : vector<8x512xf32>
    %8 = math.exp %7 : vector<8x512xf32>
    %cst_5 = arith.constant dense<0.000000e+00> : vector<512xf32>
    %9 = vector.multi_reduction <add>, %8, %cst_5 [0] : vector<8x512xf32> to vector<512xf32>
    %10 = vector.shape_cast %9 : vector<512xf32> to vector<1x512xf32>
    %11 = tpu.reciprocal %10 {approx = true} : vector<1x512xf32> -> vector<1x512xf32>
    %12 = vector.broadcast %11 : vector<1x512xf32> to vector<8x512xf32>
    %13 = arith.mulf %8, %12 : vector<8x512xf32>
    %c0_6 = arith.constant 0 : index
    %c0_7 = arith.constant 0 : index
    %c0_8 = arith.constant 0 : index
    %14 = vector.load %arg4[%c0_6, %c0_7, %c0_8] : memref<1x8x512xf32, #tpu.memory_space<vmem>>, vector<1x8x512xf32>
    %15 = vector.shape_cast %14 : vector<1x8x512xf32> to vector<8x512xf32>
    %16 = vector.shape_cast %13 : vector<8x512xf32> to vector<1x8x512xf32>
    tpu.vector_store %arg4[%c0_6, %c0_7, %c0_8], %16 {strides = array<i32>} : memref<1x8x512xf32, #tpu.memory_space<vmem>>, vector<1x8x512xf32>,
    return
  }
  func.func @transform_0(%arg0: i32, %arg1: i32) -> (i32, i32, i32) {
    %c0_i32 = arith.constant 0 : i32
    %c0_i32_0 = arith.constant 0 : i32
    return %arg0, %c0_i32, %arg1 : i32, i32, i32
  }
  func.func @transform_1(%arg0: i32, %arg1: i32) -> (i32, i32) {
    %c0_i32 = arith.constant 0 : i32
    %c0_i32_0 = arith.constant 0 : i32
    %c0_i32_1 = arith.constant 0 : i32
    return %c0_i32, %c0_i32_0 : i32, i32
  }
  func.func @transform_2(%arg0: i32, %arg1: i32) -> (i32, i32, i32) {
    %c0_i32 = arith.constant 0 : i32
    %c0_i32_0 = arith.constant 0 : i32
    return %arg0, %c0_i32, %arg1 : i32, i32, i32
  }
}

module attributes {stable_mosaic.version = 11 : i64} {
  func.func @_fwd_dice_kernel(%arg0: i32, %arg1: i32, %arg2: memref<2xf32, #tpu.memory_space<smem>>, %arg3: memref<1x8x512xf32, #tpu.memory_space<vmem>>, %arg4: memref<1x8x512xf32, #tpu.memory_space<vmem>>, %arg5: memref<8x8xf32, #tpu.memory_space<vmem>>, %arg6: memref<1x8x512xf32, #tpu.memory_space<vmem>>, %arg7: memref<1x8x512xf32, #tpu.memory_space<vmem>>, %arg8: memref<1x8x128xf32, #tpu.memory_space<vmem>>, %arg9: memref<3xf32, #tpu.memory_space<smem>>) attributes {dimension_semantics = [#tpu.dimension_semantics<parallel>, #tpu.dimension_semantics<arbitrary>], iteration_bounds = array<i64: 2, 1>, scalar_prefetch = 0 : i64, scratch_operands = 1 : i64, tpu.core_type = #tpu.core_type<tc>, window_params = [{transform_indices = @transform_0, window_bounds = array<i64: 2>}, {transform_indices = @transform_1, window_bounds = array<i64: 1, 8, 512>}, {transform_indices = @transform_2, window_bounds = array<i64: 1, 8, 512>}, {pipeline_mode = #tpu.pipeline_mode<synchronous>, transform_indices = @transform_3, window_bounds = array<i64: 8, 8>}, {transform_indices = @transform_4, window_bounds = array<i64: 1, 8, 512>}, {transform_indices = @transform_5, window_bounds = array<i64: 1, 8, 512>}, {transform_indices = @transform_6, window_bounds = array<i64: 1, 8, 128>}]} {
    %c0_i32 = arith.constant 0 : i32
    %0 = arith.cmpi eq, %arg1, %c0_i32 : i32
    %1 = arith.extui %0 : i1 to i32
    %c0_i32_0 = arith.constant 0 : i32
    %2 = arith.cmpi ne, %1, %c0_i32_0 : i32
    scf.if %2 {
      %cst_25 = arith.constant 0.000000e+00 : f32
      %c0_26 = arith.constant 0 : index
      %54 = memref.load %arg9[%c0_26] : memref<3xf32, #tpu.memory_space<smem>>
      memref.store %cst_25, %arg9[%c0_26] : memref<3xf32, #tpu.memory_space<smem>>
      %cst_27 = arith.constant 0.000000e+00 : f32
      %c1_28 = arith.constant 1 : index
      %55 = memref.load %arg9[%c1_28] : memref<3xf32, #tpu.memory_space<smem>>
      memref.store %cst_27, %arg9[%c1_28] : memref<3xf32, #tpu.memory_space<smem>>
      %cst_29 = arith.constant 0.000000e+00 : f32
      %c2_30 = arith.constant 2 : index
      %56 = memref.load %arg9[%c2_30] : memref<3xf32, #tpu.memory_space<smem>>
      memref.store %cst_29, %arg9[%c2_30] : memref<3xf32, #tpu.memory_space<smem>>
    } else {
    }
    %c0 = arith.constant 0 : index
    %c0_1 = arith.constant 0 : index
    %c0_2 = arith.constant 0 : index
    %3 = vector.load %arg3[%c0, %c0_1, %c0_2] : memref<1x8x512xf32, #tpu.memory_space<vmem>>, vector<1x8x512xf32>
    %4 = vector.shape_cast %3 : vector<1x8x512xf32> to vector<8x512xf32>
    %5 = arith.index_cast %arg0 : i32 to index
    %6 = memref.load %arg2[%5] : memref<2xf32, #tpu.memory_space<smem>>
    %c0_3 = arith.constant 0 : index
    %c0_4 = arith.constant 0 : index
    %c0_5 = arith.constant 0 : index
    %7 = vector.load %arg4[%c0_3, %c0_4, %c0_5] : memref<1x8x512xf32, #tpu.memory_space<vmem>>, vector<1x8x512xf32>
    %8 = vector.shape_cast %7 : vector<1x8x512xf32> to vector<8x512xf32>
    %9 = vector.broadcast %6 : f32 to vector<8x512xf32>
    %10 = arith.mulf %9, %8 : vector<8x512xf32>
    %11 = arith.addf %4, %10 : vector<8x512xf32>
    %c0_6 = arith.constant 0 : index
    %c0_7 = arith.constant 0 : index
    %12 = vector.load %arg5[%c0_6, %c0_7] : memref<8x8xf32, #tpu.memory_space<vmem>>, vector<8x8xf32>
    %cst = arith.constant dense<0.000000e+00> : vector<8x512xf32>
    %13 = tpu.matmul %12, %11, %cst {dimension_numbers = #tpu.dot_dimension_numbers<[1], [0], [0], [1], [0, 0, 1, 1], [], []>} : vector<8x8xf32>, vector<8x512xf32>, vector<8x512xf32> -> vector<8x512xf32>
    %cst_8 = arith.constant dense<0xFF800000> : vector<512xf32>
    %14 = vector.multi_reduction <maximumf>, %13, %cst_8 [0] : vector<8x512xf32> to vector<512xf32>
    %15 = vector.shape_cast %14 : vector<512xf32> to vector<1x512xf32>
    %16 = vector.broadcast %15 : vector<1x512xf32> to vector<8x512xf32>
    %17 = arith.subf %13, %16 : vector<8x512xf32>
    %18 = math.exp %17 : vector<8x512xf32>
    %cst_9 = arith.constant dense<0.000000e+00> : vector<512xf32>
    %19 = vector.multi_reduction <add>, %18, %cst_9 [0] : vector<8x512xf32> to vector<512xf32>
    %20 = vector.shape_cast %19 : vector<512xf32> to vector<1x512xf32>
    %21 = tpu.reciprocal %20 {approx = true} : vector<1x512xf32> -> vector<1x512xf32>
    %22 = vector.broadcast %21 : vector<1x512xf32> to vector<8x512xf32>
    %23 = arith.mulf %18, %22 : vector<8x512xf32>
    %c0_10 = arith.constant 0 : index
    %c0_11 = arith.constant 0 : index
    %c0_12 = arith.constant 0 : index
    %24 = vector.load %arg7[%c0_10, %c0_11, %c0_12] : memref<1x8x512xf32, #tpu.memory_space<vmem>>, vector<1x8x512xf32>
    %25 = vector.shape_cast %24 : vector<1x8x512xf32> to vector<8x512xf32>
    %26 = vector.shape_cast %23 : vector<8x512xf32> to vector<1x8x512xf32>
    tpu.vector_store %arg7[%c0_10, %c0_11, %c0_12], %26 {strides = array<i32>} : memref<1x8x512xf32, #tpu.memory_space<vmem>>, vector<1x8x512xf32>,
    %c0_13 = arith.constant 0 : index
    %c0_14 = arith.constant 0 : index
    %c0_15 = arith.constant 0 : index
    %27 = vector.load %arg6[%c0_13, %c0_14, %c0_15] : memref<1x8x512xf32, #tpu.memory_space<vmem>>, vector<1x8x512xf32>
    %28 = vector.shape_cast %27 : vector<1x8x512xf32> to vector<8x512xf32>
    %c0_16 = arith.constant 0 : index
    %29 = memref.load %arg9[%c0_16] : memref<3xf32, #tpu.memory_space<smem>>
    %30 = arith.mulf %23, %28 : vector<8x512xf32>
    %31 = vector.shape_cast %30 : vector<8x512xf32> to vector<1x8x512xf32>
    %cst_17 = arith.constant dense<0.000000e+00> : vector<1xf32>
    %32 = vector.multi_reduction <add>, %31, %cst_17 [1, 2] : vector<1x8x512xf32> to vector<1xf32>
    %33 = vector.shape_cast %32 : vector<1xf32> to vector<1x1x1xf32>
    %34 = vector.extract %33[0, 0, 0] : f32 from vector<1x1x1xf32>
    %35 = arith.addf %29, %34 : f32
    %c0_18 = arith.constant 0 : index
    %36 = memref.load %arg9[%c0_18] : memref<3xf32, #tpu.memory_space<smem>>
    memref.store %35, %arg9[%c0_18] : memref<3xf32, #tpu.memory_space<smem>>
    %c1 = arith.constant 1 : index
    %37 = memref.load %arg9[%c1] : memref<3xf32, #tpu.memory_space<smem>>
    %38 = vector.shape_cast %23 : vector<8x512xf32> to vector<1x8x512xf32>
    %cst_19 = arith.constant dense<0.000000e+00> : vector<1xf32>
    %39 = vector.multi_reduction <add>, %38, %cst_19 [1, 2] : vector<1x8x512xf32> to vector<1xf32>
    %40 = vector.shape_cast %39 : vector<1xf32> to vector<1x1x1xf32>
    %41 = vector.extract %40[0, 0, 0] : f32 from vector<1x1x1xf32>
    %42 = arith.addf %37, %41 : f32
    %c1_20 = arith.constant 1 : index
    %43 = memref.load %arg9[%c1_20] : memref<3xf32, #tpu.memory_space<smem>>
    memref.store %42, %arg9[%c1_20] : memref<3xf32, #tpu.memory_space<smem>>
    %c2 = arith.constant 2 : index
    %44 = memref.load %arg9[%c2] : memref<3xf32, #tpu.memory_space<smem>>
    %45 = vector.shape_cast %28 : vector<8x512xf32> to vector<1x8x512xf32>
    %cst_21 = arith.constant dense<0.000000e+00> : vector<1xf32>
    %46 = vector.multi_reduction <add>, %45, %cst_21 [1, 2] : vector<1x8x512xf32> to vector<1xf32>
    %47 = vector.shape_cast %46 : vector<1xf32> to vector<1x1x1xf32>
    %48 = vector.extract %47[0, 0, 0] : f32 from vector<1x1x1xf32>
    %49 = arith.addf %44, %48 : f32
    %c2_22 = arith.constant 2 : index
    %50 = memref.load %arg9[%c2_22] : memref<3xf32, #tpu.memory_space<smem>>
    memref.store %49, %arg9[%c2_22] : memref<3xf32, #tpu.memory_space<smem>>
    %c0_i32_23 = arith.constant 0 : i32
    %51 = arith.cmpi eq, %arg1, %c0_i32_23 : i32
    %52 = arith.extui %51 : i1 to i32
    %c0_i32_24 = arith.constant 0 : i32
    %53 = arith.cmpi ne, %52, %c0_i32_24 : i32
    scf.if %53 {
      %54 = tpu.iota {dimensions = array<i32: 1>} : vector<8x128xi32>
      %c0_i32_25 = arith.constant 0 : i32
      %55 = vector.broadcast %c0_i32_25 : i32 to vector<8x128xi32>
      %56 = arith.cmpi eq, %54, %55 : vector<8x128xi32>
      %c0_26 = arith.constant 0 : index
      %57 = memref.load %arg9[%c0_26] : memref<3xf32, #tpu.memory_space<smem>>
      %c1_i32 = arith.constant 1 : i32
      %58 = vector.broadcast %c1_i32 : i32 to vector<8x128xi32>
      %59 = arith.cmpi eq, %54, %58 : vector<8x128xi32>
      %c1_27 = arith.constant 1 : index
      %60 = memref.load %arg9[%c1_27] : memref<3xf32, #tpu.memory_space<smem>>
      %c2_i32 = arith.constant 2 : i32
      %61 = vector.broadcast %c2_i32 : i32 to vector<8x128xi32>
      %62 = arith.cmpi eq, %54, %61 : vector<8x128xi32>
      %c2_28 = arith.constant 2 : index
      %63 = memref.load %arg9[%c2_28] : memref<3xf32, #tpu.memory_space<smem>>
      %cst_29 = arith.constant 0.000000e+00 : f32
      %64 = vector.broadcast %63 : f32 to vector<8x128xf32>
      %65 = vector.broadcast %cst_29 : f32 to vector<8x128xf32>
      %66 = arith.select %62, %64, %65 : vector<8x128xi1>, vector<8x128xf32>
      %67 = vector.broadcast %60 : f32 to vector<8x128xf32>
      %68 = arith.select %59, %67, %66 : vector<8x128xi1>, vector<8x128xf32>
      %69 = vector.broadcast %57 : f32 to vector<8x128xf32>
      %70 = arith.select %56, %69, %68 : vector<8x128xi1>, vector<8x128xf32>
      %c0_30 = arith.constant 0 : index
      %c0_31 = arith.constant 0 : index
      %c0_32 = arith.constant 0 : index
      %71 = vector.load %arg8[%c0_30, %c0_31, %c0_32] : memref<1x8x128xf32, #tpu.memory_space<vmem>>, vector<1x8x128xf32>
      %72 = vector.shape_cast %71 : vector<1x8x128xf32> to vector<8x128xf32>
      %73 = vector.shape_cast %70 : vector<8x128xf32> to vector<1x8x128xf32>
      tpu.vector_store %arg8[%c0_30, %c0_31, %c0_32], %73 {strides = array<i32>} : memref<1x8x128xf32, #tpu.memory_space<vmem>>, vector<1x8x128xf32>,
    } else {
    }
    return
  }
  func.func @transform_0(%arg0: i32, %arg1: i32) -> i32 {
    %c0_i32 = arith.constant 0 : i32
    %c0_i32_0 = arith.constant 0 : i32
    return %c0_i32 : i32
  }
  func.func @transform_1(%arg0: i32, %arg1: i32) -> (i32, i32, i32) {
    %c0_i32 = arith.constant 0 : i32
    %c0_i32_0 = arith.constant 0 : i32
    return %arg0, %c0_i32, %arg1 : i32, i32, i32
  }
  func.func @transform_2(%arg0: i32, %arg1: i32) -> (i32, i32, i32) {
    %c0_i32 = arith.constant 0 : i32
    %c0_i32_0 = arith.constant 0 : i32
    return %arg0, %c0_i32, %arg1 : i32, i32, i32
  }
  func.func @transform_3(%arg0: i32, %arg1: i32) -> (i32, i32) {
    %c0_i32 = arith.constant 0 : i32
    %c0_i32_0 = arith.constant 0 : i32
    %c0_i32_1 = arith.constant 0 : i32
    return %c0_i32, %c0_i32_0 : i32, i32
  }
  func.func @transform_4(%arg0: i32, %arg1: i32) -> (i32, i32, i32) {
    %c0_i32 = arith.constant 0 : i32
    %c0_i32_0 = arith.constant 0 : i32
    return %arg0, %c0_i32, %arg1 : i32, i32, i32
  }
  func.func @transform_5(%arg0: i32, %arg1: i32) -> (i32, i32, i32) {
    %c0_i32 = arith.constant 0 : i32
    %c0_i32_0 = arith.constant 0 : i32
    return %arg0, %c0_i32, %arg1 : i32, i32, i32
  }
  func.func @transform_6(%arg0: i32, %arg1: i32) -> (i32, i32, i32) {
    %c0_i32 = arith.constant 0 : i32
    %c0_i32_0 = arith.constant 0 : i32
    %c0_i32_1 = arith.constant 0 : i32
    return %arg0, %c0_i32, %c0_i32_0 : i32, i32, i32
  }
}

module attributes {stable_mosaic.version = 11 : i64} {
  func.func @_vat_grad_kernel(%arg0: i32, %arg1: i32, %arg2: memref<2xf32, #tpu.memory_space<smem>>, %arg3: memref<1x8x512xf32, #tpu.memory_space<vmem>>, %arg4: memref<1x8x512xf32, #tpu.memory_space<vmem>>, %arg5: memref<8x8xf32, #tpu.memory_space<vmem>>, %arg6: memref<1x8x512xf32, #tpu.memory_space<vmem>>, %arg7: memref<1x8x128xf32, #tpu.memory_space<vmem>>, %arg8: memref<1xf32, #tpu.memory_space<smem>>) attributes {dimension_semantics = [#tpu.dimension_semantics<parallel>, #tpu.dimension_semantics<arbitrary>], iteration_bounds = array<i64: 2, 1>, scalar_prefetch = 0 : i64, scratch_operands = 1 : i64, tpu.core_type = #tpu.core_type<tc>, window_params = [{transform_indices = @transform_0, window_bounds = array<i64: 2>}, {transform_indices = @transform_1, window_bounds = array<i64: 1, 8, 512>}, {transform_indices = @transform_2, window_bounds = array<i64: 1, 8, 512>}, {pipeline_mode = #tpu.pipeline_mode<synchronous>, transform_indices = @transform_3, window_bounds = array<i64: 8, 8>}, {transform_indices = @transform_4, window_bounds = array<i64: 1, 8, 512>}, {transform_indices = @transform_5, window_bounds = array<i64: 1, 8, 128>}]} {
    %c0_i32 = arith.constant 0 : i32
    %0 = arith.cmpi eq, %arg1, %c0_i32 : i32
    %1 = arith.extui %0 : i1 to i32
    %c0_i32_0 = arith.constant 0 : i32
    %2 = arith.cmpi ne, %1, %c0_i32_0 : i32
    scf.if %2 {
      %cst_21 = arith.constant 0.000000e+00 : f32
      %c0_22 = arith.constant 0 : index
      %41 = memref.load %arg8[%c0_22] : memref<1xf32, #tpu.memory_space<smem>>
      memref.store %cst_21, %arg8[%c0_22] : memref<1xf32, #tpu.memory_space<smem>>
    } else {
    }
    %c0 = arith.constant 0 : index
    %3 = memref.load %arg2[%c0] : memref<2xf32, #tpu.memory_space<smem>>
    %c1 = arith.constant 1 : index
    %4 = memref.load %arg2[%c1] : memref<2xf32, #tpu.memory_space<smem>>
    %cst = arith.constant 1.000000e+00 : f32
    %5 = arith.divf %cst, %4 : f32
    %c0_1 = arith.constant 0 : index
    %c0_2 = arith.constant 0 : index
    %c0_3 = arith.constant 0 : index
    %6 = vector.load %arg3[%c0_1, %c0_2, %c0_3] : memref<1x8x512xf32, #tpu.memory_space<vmem>>, vector<1x8x512xf32>
    %7 = vector.shape_cast %6 : vector<1x8x512xf32> to vector<8x512xf32>
    %c0_4 = arith.constant 0 : index
    %c0_5 = arith.constant 0 : index
    %c0_6 = arith.constant 0 : index
    %8 = vector.load %arg4[%c0_4, %c0_5, %c0_6] : memref<1x8x512xf32, #tpu.memory_space<vmem>>, vector<1x8x512xf32>
    %9 = vector.shape_cast %8 : vector<1x8x512xf32> to vector<8x512xf32>
    %10 = arith.mulf %3, %5 : f32
    %11 = arith.mulf %10, %5 : f32
    %cst_7 = arith.constant 2.000000e+00 : f32
    %12 = arith.mulf %cst_7, %5 : f32
    %13 = vector.broadcast %12 : f32 to vector<8x512xf32>
    %14 = arith.mulf %13, %9 : vector<8x512xf32>
    %15 = vector.broadcast %11 : f32 to vector<8x512xf32>
    %16 = arith.subf %15, %14 : vector<8x512xf32>
    %17 = arith.mulf %16, %7 : vector<8x512xf32>
    %cst_8 = arith.constant dense<0.000000e+00> : vector<512xf32>
    %18 = vector.multi_reduction <add>, %17, %cst_8 [0] : vector<8x512xf32> to vector<512xf32>
    %19 = vector.shape_cast %18 : vector<512xf32> to vector<1x512xf32>
    %20 = vector.broadcast %19 : vector<1x512xf32> to vector<8x512xf32>
    %21 = arith.subf %16, %20 : vector<8x512xf32>
    %22 = arith.mulf %7, %21 : vector<8x512xf32>
    %c0_9 = arith.constant 0 : index
    %c0_10 = arith.constant 0 : index
    %23 = vector.load %arg5[%c0_9, %c0_10] : memref<8x8xf32, #tpu.memory_space<vmem>>, vector<8x8xf32>
    %cst_11 = arith.constant dense<0.000000e+00> : vector<8x512xf32>
    %24 = tpu.matmul %23, %22, %cst_11 {dimension_numbers = #tpu.dot_dimension_numbers<[1], [0], [0], [1], [0, 0, 1, 1], [], []>} : vector<8x8xf32>, vector<8x512xf32>, vector<8x512xf32> -> vector<8x512xf32>
    %cst_12 = arith.constant 1.000000e+01 : f32
    %25 = vector.broadcast %cst_12 : f32 to vector<8x512xf32>
    %26 = arith.mulf %25, %24 : vector<8x512xf32>
    %c0_13 = arith.constant 0 : index
    %c0_14 = arith.constant 0 : index
    %c0_15 = arith.constant 0 : index
    %27 = vector.load %arg6[%c0_13, %c0_14, %c0_15] : memref<1x8x512xf32, #tpu.memory_space<vmem>>, vector<1x8x512xf32>
    %28 = vector.shape_cast %27 : vector<1x8x512xf32> to vector<8x512xf32>
    %29 = vector.shape_cast %26 : vector<8x512xf32> to vector<1x8x512xf32>
    tpu.vector_store %arg6[%c0_13, %c0_14, %c0_15], %29 {strides = array<i32>} : memref<1x8x512xf32, #tpu.memory_space<vmem>>, vector<1x8x512xf32>,
    %c0_16 = arith.constant 0 : index
    %30 = memref.load %arg8[%c0_16] : memref<1xf32, #tpu.memory_space<smem>>
    %31 = arith.mulf %26, %26 : vector<8x512xf32>
    %32 = vector.shape_cast %31 : vector<8x512xf32> to vector<1x8x512xf32>
    %cst_17 = arith.constant dense<0.000000e+00> : vector<1xf32>
    %33 = vector.multi_reduction <add>, %32, %cst_17 [1, 2] : vector<1x8x512xf32> to vector<1xf32>
    %34 = vector.shape_cast %33 : vector<1xf32> to vector<1x1x1xf32>
    %35 = vector.extract %34[0, 0, 0] : f32 from vector<1x1x1xf32>
    %36 = arith.addf %30, %35 : f32
    %c0_18 = arith.constant 0 : index
    %37 = memref.load %arg8[%c0_18] : memref<1xf32, #tpu.memory_space<smem>>
    memref.store %36, %arg8[%c0_18] : memref<1xf32, #tpu.memory_space<smem>>
    %c0_i32_19 = arith.constant 0 : i32
    %38 = arith.cmpi eq, %arg1, %c0_i32_19 : i32
    %39 = arith.extui %38 : i1 to i32
    %c0_i32_20 = arith.constant 0 : i32
    %40 = arith.cmpi ne, %39, %c0_i32_20 : i32
    scf.if %40 {
      %41 = tpu.iota {dimensions = array<i32: 1>} : vector<8x128xi32>
      %c0_i32_21 = arith.constant 0 : i32
      %42 = vector.broadcast %c0_i32_21 : i32 to vector<8x128xi32>
      %43 = arith.cmpi eq, %41, %42 : vector<8x128xi32>
      %c0_22 = arith.constant 0 : index
      %44 = memref.load %arg8[%c0_22] : memref<1xf32, #tpu.memory_space<smem>>
      %cst_23 = arith.constant 0.000000e+00 : f32
      %45 = vector.broadcast %44 : f32 to vector<8x128xf32>
      %46 = vector.broadcast %cst_23 : f32 to vector<8x128xf32>
      %47 = arith.select %43, %45, %46 : vector<8x128xi1>, vector<8x128xf32>
      %c0_24 = arith.constant 0 : index
      %c0_25 = arith.constant 0 : index
      %c0_26 = arith.constant 0 : index
      %48 = vector.load %arg7[%c0_24, %c0_25, %c0_26] : memref<1x8x128xf32, #tpu.memory_space<vmem>>, vector<1x8x128xf32>
      %49 = vector.shape_cast %48 : vector<1x8x128xf32> to vector<8x128xf32>
      %50 = vector.shape_cast %47 : vector<8x128xf32> to vector<1x8x128xf32>
      tpu.vector_store %arg7[%c0_24, %c0_25, %c0_26], %50 {strides = array<i32>} : memref<1x8x128xf32, #tpu.memory_space<vmem>>, vector<1x8x128xf32>,
    } else {
    }
    return
  }
  func.func @transform_0(%arg0: i32, %arg1: i32) -> i32 {
    %c0_i32 = arith.constant 0 : i32
    %c0_i32_0 = arith.constant 0 : i32
    return %c0_i32 : i32
  }
  func.func @transform_1(%arg0: i32, %arg1: i32) -> (i32, i32, i32) {
    %c0_i32 = arith.constant 0 : i32
    %c0_i32_0 = arith.constant 0 : i32
    return %arg0, %c0_i32, %arg1 : i32, i32, i32
  }
  func.func @transform_2(%arg0: i32, %arg1: i32) -> (i32, i32, i32) {
    %c0_i32 = arith.constant 0 : i32
    %c0_i32_0 = arith.constant 0 : i32
    return %arg0, %c0_i32, %arg1 : i32, i32, i32
  }
  func.func @transform_3(%arg0: i32, %arg1: i32) -> (i32, i32) {
    %c0_i32 = arith.constant 0 : i32
    %c0_i32_0 = arith.constant 0 : i32
    %c0_i32_1 = arith.constant 0 : i32
    return %c0_i32, %c0_i32_0 : i32, i32
  }
  func.func @transform_4(%arg0: i32, %arg1: i32) -> (i32, i32, i32) {
    %c0_i32 = arith.constant 0 : i32
    %c0_i32_0 = arith.constant 0 : i32
    return %arg0, %c0_i32, %arg1 : i32, i32, i32
  }
  func.func @transform_5(%arg0: i32, %arg1: i32) -> (i32, i32, i32) {
    %c0_i32 = arith.constant 0 : i32
    %c0_i32_0 = arith.constant 0 : i32
    %c0_i32_1 = arith.constant 0 : i32
    return %arg0, %c0_i32, %c0_i32_0 : i32, i32, i32
  }
}

module attributes {stable_mosaic.version = 11 : i64} {
  func.func @_fwd_dice_kernel(%arg0: i32, %arg1: i32, %arg2: memref<2xf32, #tpu.memory_space<smem>>, %arg3: memref<1x8x512xf32, #tpu.memory_space<vmem>>, %arg4: memref<1x8x512xf32, #tpu.memory_space<vmem>>, %arg5: memref<8x8xf32, #tpu.memory_space<vmem>>, %arg6: memref<1x8x512xf32, #tpu.memory_space<vmem>>, %arg7: memref<1x8x128xf32, #tpu.memory_space<vmem>>, %arg8: memref<3xf32, #tpu.memory_space<smem>>) attributes {dimension_semantics = [#tpu.dimension_semantics<parallel>, #tpu.dimension_semantics<arbitrary>], iteration_bounds = array<i64: 2, 1>, scalar_prefetch = 0 : i64, scratch_operands = 1 : i64, tpu.core_type = #tpu.core_type<tc>, window_params = [{transform_indices = @transform_0, window_bounds = array<i64: 2>}, {transform_indices = @transform_1, window_bounds = array<i64: 1, 8, 512>}, {transform_indices = @transform_2, window_bounds = array<i64: 1, 8, 512>}, {pipeline_mode = #tpu.pipeline_mode<synchronous>, transform_indices = @transform_3, window_bounds = array<i64: 8, 8>}, {transform_indices = @transform_4, window_bounds = array<i64: 1, 8, 512>}, {transform_indices = @transform_5, window_bounds = array<i64: 1, 8, 128>}]} {
    %c0_i32 = arith.constant 0 : i32
    %0 = arith.cmpi eq, %arg1, %c0_i32 : i32
    %1 = arith.extui %0 : i1 to i32
    %c0_i32_0 = arith.constant 0 : i32
    %2 = arith.cmpi ne, %1, %c0_i32_0 : i32
    scf.if %2 {
      %cst_22 = arith.constant 0.000000e+00 : f32
      %c0_23 = arith.constant 0 : index
      %51 = memref.load %arg8[%c0_23] : memref<3xf32, #tpu.memory_space<smem>>
      memref.store %cst_22, %arg8[%c0_23] : memref<3xf32, #tpu.memory_space<smem>>
      %cst_24 = arith.constant 0.000000e+00 : f32
      %c1_25 = arith.constant 1 : index
      %52 = memref.load %arg8[%c1_25] : memref<3xf32, #tpu.memory_space<smem>>
      memref.store %cst_24, %arg8[%c1_25] : memref<3xf32, #tpu.memory_space<smem>>
      %cst_26 = arith.constant 0.000000e+00 : f32
      %c2_27 = arith.constant 2 : index
      %53 = memref.load %arg8[%c2_27] : memref<3xf32, #tpu.memory_space<smem>>
      memref.store %cst_26, %arg8[%c2_27] : memref<3xf32, #tpu.memory_space<smem>>
    } else {
    }
    %c0 = arith.constant 0 : index
    %c0_1 = arith.constant 0 : index
    %c0_2 = arith.constant 0 : index
    %3 = vector.load %arg3[%c0, %c0_1, %c0_2] : memref<1x8x512xf32, #tpu.memory_space<vmem>>, vector<1x8x512xf32>
    %4 = vector.shape_cast %3 : vector<1x8x512xf32> to vector<8x512xf32>
    %5 = arith.index_cast %arg0 : i32 to index
    %6 = memref.load %arg2[%5] : memref<2xf32, #tpu.memory_space<smem>>
    %c0_3 = arith.constant 0 : index
    %c0_4 = arith.constant 0 : index
    %c0_5 = arith.constant 0 : index
    %7 = vector.load %arg4[%c0_3, %c0_4, %c0_5] : memref<1x8x512xf32, #tpu.memory_space<vmem>>, vector<1x8x512xf32>
    %8 = vector.shape_cast %7 : vector<1x8x512xf32> to vector<8x512xf32>
    %9 = vector.broadcast %6 : f32 to vector<8x512xf32>
    %10 = arith.mulf %9, %8 : vector<8x512xf32>
    %11 = arith.addf %4, %10 : vector<8x512xf32>
    %c0_6 = arith.constant 0 : index
    %c0_7 = arith.constant 0 : index
    %12 = vector.load %arg5[%c0_6, %c0_7] : memref<8x8xf32, #tpu.memory_space<vmem>>, vector<8x8xf32>
    %cst = arith.constant dense<0.000000e+00> : vector<8x512xf32>
    %13 = tpu.matmul %12, %11, %cst {dimension_numbers = #tpu.dot_dimension_numbers<[1], [0], [0], [1], [0, 0, 1, 1], [], []>} : vector<8x8xf32>, vector<8x512xf32>, vector<8x512xf32> -> vector<8x512xf32>
    %cst_8 = arith.constant dense<0xFF800000> : vector<512xf32>
    %14 = vector.multi_reduction <maximumf>, %13, %cst_8 [0] : vector<8x512xf32> to vector<512xf32>
    %15 = vector.shape_cast %14 : vector<512xf32> to vector<1x512xf32>
    %16 = vector.broadcast %15 : vector<1x512xf32> to vector<8x512xf32>
    %17 = arith.subf %13, %16 : vector<8x512xf32>
    %18 = math.exp %17 : vector<8x512xf32>
    %cst_9 = arith.constant dense<0.000000e+00> : vector<512xf32>
    %19 = vector.multi_reduction <add>, %18, %cst_9 [0] : vector<8x512xf32> to vector<512xf32>
    %20 = vector.shape_cast %19 : vector<512xf32> to vector<1x512xf32>
    %21 = tpu.reciprocal %20 {approx = true} : vector<1x512xf32> -> vector<1x512xf32>
    %22 = vector.broadcast %21 : vector<1x512xf32> to vector<8x512xf32>
    %23 = arith.mulf %18, %22 : vector<8x512xf32>
    %c0_10 = arith.constant 0 : index
    %c0_11 = arith.constant 0 : index
    %c0_12 = arith.constant 0 : index
    %24 = vector.load %arg6[%c0_10, %c0_11, %c0_12] : memref<1x8x512xf32, #tpu.memory_space<vmem>>, vector<1x8x512xf32>
    %25 = vector.shape_cast %24 : vector<1x8x512xf32> to vector<8x512xf32>
    %c0_13 = arith.constant 0 : index
    %26 = memref.load %arg8[%c0_13] : memref<3xf32, #tpu.memory_space<smem>>
    %27 = arith.mulf %23, %25 : vector<8x512xf32>
    %28 = vector.shape_cast %27 : vector<8x512xf32> to vector<1x8x512xf32>
    %cst_14 = arith.constant dense<0.000000e+00> : vector<1xf32>
    %29 = vector.multi_reduction <add>, %28, %cst_14 [1, 2] : vector<1x8x512xf32> to vector<1xf32>
    %30 = vector.shape_cast %29 : vector<1xf32> to vector<1x1x1xf32>
    %31 = vector.extract %30[0, 0, 0] : f32 from vector<1x1x1xf32>
    %32 = arith.addf %26, %31 : f32
    %c0_15 = arith.constant 0 : index
    %33 = memref.load %arg8[%c0_15] : memref<3xf32, #tpu.memory_space<smem>>
    memref.store %32, %arg8[%c0_15] : memref<3xf32, #tpu.memory_space<smem>>
    %c1 = arith.constant 1 : index
    %34 = memref.load %arg8[%c1] : memref<3xf32, #tpu.memory_space<smem>>
    %35 = vector.shape_cast %23 : vector<8x512xf32> to vector<1x8x512xf32>
    %cst_16 = arith.constant dense<0.000000e+00> : vector<1xf32>
    %36 = vector.multi_reduction <add>, %35, %cst_16 [1, 2] : vector<1x8x512xf32> to vector<1xf32>
    %37 = vector.shape_cast %36 : vector<1xf32> to vector<1x1x1xf32>
    %38 = vector.extract %37[0, 0, 0] : f32 from vector<1x1x1xf32>
    %39 = arith.addf %34, %38 : f32
    %c1_17 = arith.constant 1 : index
    %40 = memref.load %arg8[%c1_17] : memref<3xf32, #tpu.memory_space<smem>>
    memref.store %39, %arg8[%c1_17] : memref<3xf32, #tpu.memory_space<smem>>
    %c2 = arith.constant 2 : index
    %41 = memref.load %arg8[%c2] : memref<3xf32, #tpu.memory_space<smem>>
    %42 = vector.shape_cast %25 : vector<8x512xf32> to vector<1x8x512xf32>
    %cst_18 = arith.constant dense<0.000000e+00> : vector<1xf32>
    %43 = vector.multi_reduction <add>, %42, %cst_18 [1, 2] : vector<1x8x512xf32> to vector<1xf32>
    %44 = vector.shape_cast %43 : vector<1xf32> to vector<1x1x1xf32>
    %45 = vector.extract %44[0, 0, 0] : f32 from vector<1x1x1xf32>
    %46 = arith.addf %41, %45 : f32
    %c2_19 = arith.constant 2 : index
    %47 = memref.load %arg8[%c2_19] : memref<3xf32, #tpu.memory_space<smem>>
    memref.store %46, %arg8[%c2_19] : memref<3xf32, #tpu.memory_space<smem>>
    %c0_i32_20 = arith.constant 0 : i32
    %48 = arith.cmpi eq, %arg1, %c0_i32_20 : i32
    %49 = arith.extui %48 : i1 to i32
    %c0_i32_21 = arith.constant 0 : i32
    %50 = arith.cmpi ne, %49, %c0_i32_21 : i32
    scf.if %50 {
      %51 = tpu.iota {dimensions = array<i32: 1>} : vector<8x128xi32>
      %c0_i32_22 = arith.constant 0 : i32
      %52 = vector.broadcast %c0_i32_22 : i32 to vector<8x128xi32>
      %53 = arith.cmpi eq, %51, %52 : vector<8x128xi32>
      %c0_23 = arith.constant 0 : index
      %54 = memref.load %arg8[%c0_23] : memref<3xf32, #tpu.memory_space<smem>>
      %c1_i32 = arith.constant 1 : i32
      %55 = vector.broadcast %c1_i32 : i32 to vector<8x128xi32>
      %56 = arith.cmpi eq, %51, %55 : vector<8x128xi32>
      %c1_24 = arith.constant 1 : index
      %57 = memref.load %arg8[%c1_24] : memref<3xf32, #tpu.memory_space<smem>>
      %c2_i32 = arith.constant 2 : i32
      %58 = vector.broadcast %c2_i32 : i32 to vector<8x128xi32>
      %59 = arith.cmpi eq, %51, %58 : vector<8x128xi32>
      %c2_25 = arith.constant 2 : index
      %60 = memref.load %arg8[%c2_25] : memref<3xf32, #tpu.memory_space<smem>>
      %cst_26 = arith.constant 0.000000e+00 : f32
      %61 = vector.broadcast %60 : f32 to vector<8x128xf32>
      %62 = vector.broadcast %cst_26 : f32 to vector<8x128xf32>
      %63 = arith.select %59, %61, %62 : vector<8x128xi1>, vector<8x128xf32>
      %64 = vector.broadcast %57 : f32 to vector<8x128xf32>
      %65 = arith.select %56, %64, %63 : vector<8x128xi1>, vector<8x128xf32>
      %66 = vector.broadcast %54 : f32 to vector<8x128xf32>
      %67 = arith.select %53, %66, %65 : vector<8x128xi1>, vector<8x128xf32>
      %c0_27 = arith.constant 0 : index
      %c0_28 = arith.constant 0 : index
      %c0_29 = arith.constant 0 : index
      %68 = vector.load %arg7[%c0_27, %c0_28, %c0_29] : memref<1x8x128xf32, #tpu.memory_space<vmem>>, vector<1x8x128xf32>
      %69 = vector.shape_cast %68 : vector<1x8x128xf32> to vector<8x128xf32>
      %70 = vector.shape_cast %67 : vector<8x128xf32> to vector<1x8x128xf32>
      tpu.vector_store %arg7[%c0_27, %c0_28, %c0_29], %70 {strides = array<i32>} : memref<1x8x128xf32, #tpu.memory_space<vmem>>, vector<1x8x128xf32>,
    } else {
    }
    return
  }
  func.func @transform_0(%arg0: i32, %arg1: i32) -> i32 {
    %c0_i32 = arith.constant 0 : i32
    %c0_i32_0 = arith.constant 0 : i32
    return %c0_i32 : i32
  }
  func.func @transform_1(%arg0: i32, %arg1: i32) -> (i32, i32, i32) {
    %c0_i32 = arith.constant 0 : i32
    %c0_i32_0 = arith.constant 0 : i32
    return %arg0, %c0_i32, %arg1 : i32, i32, i32
  }
  func.func @transform_2(%arg0: i32, %arg1: i32) -> (i32, i32, i32) {
    %c0_i32 = arith.constant 0 : i32
    %c0_i32_0 = arith.constant 0 : i32
    return %arg0, %c0_i32, %arg1 : i32, i32, i32
  }
  func.func @transform_3(%arg0: i32, %arg1: i32) -> (i32, i32) {
    %c0_i32 = arith.constant 0 : i32
    %c0_i32_0 = arith.constant 0 : i32
    %c0_i32_1 = arith.constant 0 : i32
    return %c0_i32, %c0_i32_0 : i32, i32
  }
  func.func @transform_4(%arg0: i32, %arg1: i32) -> (i32, i32, i32) {
    %c0_i32 = arith.constant 0 : i32
    %c0_i32_0 = arith.constant 0 : i32
    return %arg0, %c0_i32, %arg1 : i32, i32, i32
  }
  func.func @transform_5(%arg0: i32, %arg1: i32) -> (i32, i32, i32) {
    %c0_i32 = arith.constant 0 : i32
    %c0_i32_0 = arith.constant 0 : i32
    %c0_i32_1 = arith.constant 0 : i32
    return %arg0, %c0_i32, %c0_i32_0 : i32, i32, i32
  }
}

</mosaic_0001>

<llo_original>
// kernel: vat3d_loss.4
$region0: #{vat3d_loss.4}
  #allocation0 [shape = 'u32[]', space=smem, size = 0x4, offset = 0x4, fixed_abs, tag = 'smem constant byte address 0x4 - core index']
  #allocation1 [shape = 'u32[72,128]{1,0:T(1,128)}', space=vmem, size = 0x9000, scoped, tag = 'internal scratch']
  %s0 = inlined_call_operand.vmem [shape: f32[2,8,512], index: 0, kind: input, shape index: {}]
  %s1 = inlined_call_operand.vmem [shape: f32[8,8], index: 1, kind: input, shape index: {}]
  %s2 = inlined_call_operand.vmem [shape: f32[2,8,512], index: 2, kind: output, shape index: {}]
  %s3 = sld [smem:[#allocation0]]
  $region41: #{vat3d_loss.4} parent=0
    _
  %s5 = ssub.s32 1, %s3
  %s6 = scalar_select 0, %s5, %s3
  loop: start=0, step=1, limit=4
  $region2: #{vat3d_loss.4} parent=0 // loop_pre_header
    _
  $region3: #{vat3d_loss.4} parent=0 // loop_header
    %s8 = sphi 0, %s12
    %p9 = scmp.ge.s32.totalorder %s8, 4
    %s15 = sphi 0, %s27
    %s16 = sphi 0, %s23
    %s17 = sphi 0, %s15
    %s18 = sphi 0, %s16
    %s19 = sphi 0, %s17
    %s20 = sphi 0, %s18
    %s32 = sphi 0, %s34
    %s35 = sphi 0, %s32
    %s36 = sphi 0, %s35
    %s52 = sphi 0, %s36
    %s56 = sphi 0, %s56
    %s58 = sphi 0, %s56
    %s59 = sphi 0, %s58
    %s73 = sphi 0, %s59
    %s81 = sphi 0, %s83
    %s84 = sphi 0, %s81
    %s85 = sphi 0, %s84
    %s101 = sphi 0, %s85
  $region4: #{vat3d_loss.4} parent=0 // loop_header_branch
    %11 = sbr.rel (%p9) target = $region8
  $region5: #{vat3d_loss.4} parent=0 // loop_body
    %s13 = ssub.s32 %s8, 1
    %s14 = ssub.s32 %s8, 2
    %s21 = sadd.s32 1, %s16
    %p22 = scmp.ge.s32.totalorder %s21, 1
    %s23 = scalar_select %p22, 0, %s21
    %s24 = sadd.s32 1, %s15
    %s25 = scalar_select %p22, %s24, %s15
    %p26 = scmp.ge.s32.totalorder %s25, 2
    %s27 = scalar_select %p26, 0, %s25
    %s28 = ssub.s32 %s15, %s27
    %s29 = ssub.s32 %s16, %s23
    %s30 = sor.u32 %s28, %s29
    %p31 = scmp.eq.s32.totalorder %s30, 0
    %s33 = sadd.s32 %s32, 1
    %s34 = scalar_select %p31, %s32, %s33
    %p37 = pneg %p31
    %p38 = scmp.eq.s32.totalorder %s8, 1
    %p39 = por %p37, %p38
    %p40 = scmp.ne.s32.totalorder %s32, %s35
    %p41 = scmp.eq.s32.totalorder %s8, 0
    %p42 = por %p40, %p41
    %p43 = scmp.ne.s32.totalorder %s32, %s35
    %p44 = scmp.eq.s32.totalorder %s13, 1
    %p45 = por %p43, %p44
    %p46 = scmp.ne.s32.totalorder %s35, %s36
    %p47 = scmp.eq.s32.totalorder %s13, 0
    %p48 = por %p46, %p47
    %p49 = scmp.ne.s32.totalorder %s35, %s36
    %p50 = scmp.eq.s32.totalorder %s14, 1
    %p51 = por %p49, %p50
    %p53 = scmp.ne.s32.totalorder %s36, %s52
    %p54 = scmp.eq.s32.totalorder %s14, 0
    %p55 = por %p53, %p54
    %s57 = sadd.s32 %s56, 1
    %p60 = scmp.eq.s32.totalorder %s8, 1
    %p61 = scmp.ne.s32.totalorder %s56, %s58
    %p62 = scmp.eq.s32.totalorder %s8, 0
    %p63 = por %p61, %p62
    %p64 = scmp.ne.s32.totalorder %s56, %s58
    %p65 = scmp.eq.s32.totalorder %s13, 1
    %p66 = por %p64, %p65
    %p67 = scmp.ne.s32.totalorder %s58, %s59
    %p68 = scmp.eq.s32.totalorder %s13, 0
    %p69 = por %p67, %p68
    %p70 = scmp.ne.s32.totalorder %s58, %s59
    %p71 = scmp.eq.s32.totalorder %s14, 1
    %p72 = por %p70, %p71
    %p74 = scmp.ne.s32.totalorder %s59, %s73
    %p75 = scmp.eq.s32.totalorder %s14, 0
    %p76 = por %p74, %p75
    %s77 = ssub.s32 %s15, %s27
    %s78 = ssub.s32 %s16, %s23
    %s79 = sor.u32 %s77, %s78
    %p80 = scmp.eq.s32.totalorder %s79, 0
    %s82 = sadd.s32 %s81, 1
    %s83 = scalar_select %p80, %s81, %s82
    %p86 = pneg %p80
    %p87 = scmp.eq.s32.totalorder %s8, 1
    %p88 = por %p86, %p87
    %p89 = scmp.ne.s32.totalorder %s81, %s84
    %p90 = scmp.eq.s32.totalorder %s8, 0
    %p91 = por %p89, %p90
    %p92 = scmp.ne.s32.totalorder %s81, %s84
    %p93 = scmp.eq.s32.totalorder %s13, 1
    %p94 = por %p92, %p93
    %p95 = scmp.ne.s32.totalorder %s84, %s85
    %p96 = scmp.eq.s32.totalorder %s13, 0
    %p97 = por %p95, %p96
    %p98 = scmp.ne.s32.totalorder %s84, %s85
    %p99 = scmp.eq.s32.totalorder %s14, 1
    %p100 = por %p98, %p99
    %p102 = scmp.ne.s32.totalorder %s85, %s101
    %p103 = scmp.eq.s32.totalorder %s14, 0
    %p104 = por %p102, %p103
    %p105 = scmp.le.s32.totalorder 1, %s8
    %p106 = scmp.lt.s32.totalorder %s8, 3
    %p107 = pnand %p105, %p106
    %p108 = pneg %p107
    // Predicated region
    $region9: #{vat3d_loss.4} parent=5 // pred_check
      _
    $region10: #{vat3d_loss.4} parent=5 // pred_check_branch
      %110 = sbr.rel (%p107) target = $region12
    $region11: #{vat3d_loss.4} parent=5 // pred_region
      %s111 = ssub.s32 %s8, 1
      // Predicated region
      $region13: #{vat3d_loss.4} parent=11 // pred_check
        %p112 = pneg %p69
      $region14: #{vat3d_loss.4} parent=11 // pred_check_branch
        %114 = sbr.rel (%p112) target = $region16
      $region15: #{vat3d_loss.4} parent=11 // pred_region
        _
      $region16: #{vat3d_loss.4} parent=11 // pred_fallthru
        _
    $region12: #{vat3d_loss.4} parent=5 // pred_fallthru
      _
    %p115 = scmp.lt.s32.totalorder %s8, 2
    // Predicated region
    $region17: #{vat3d_loss.4} parent=5 // pred_check
      %p116 = pneg %p115
    $region18: #{vat3d_loss.4} parent=5 // pred_check_branch
      %118 = sbr.rel (%p116) target = $region20
    $region19: #{vat3d_loss.4} parent=5 // pred_region
      // Predicated region
      $region21: #{vat3d_loss.4} parent=19 // pred_check
        %p119 = pneg %p42
      $region22: #{vat3d_loss.4} parent=19 // pred_check_branch
        %121 = sbr.rel (%p119) target = $region24
      $region23: #{vat3d_loss.4} parent=19 // pred_region
        %s122 = smul.u32 4, %s16
        %p123 = scmp.lt.s32.totalorder %s15, 1
        %s124 = scalar_select %p123, %s15, 1
        %p125 = scmp.lt.s32.totalorder %s122, 3
        %s126 = scalar_select %p125, %s122, 3
        %s127 = smul.addr %s124, 4
        %s128 = sadd.s32 %s126, %s127
        %s129 = smul.addr %s128, 8
        %s130 = scalar_lea.vmem %s0, %s129
        %s131 = smul.u32 4, %s16
      $region24: #{vat3d_loss.4} parent=19 // pred_fallthru
        _
    $region20: #{vat3d_loss.4} parent=5 // pred_fallthru
      _
    %p132 = scmp.le.s32.totalorder 1, %s8
    %p133 = scmp.lt.s32.totalorder %s8, 3
    %p134 = pnand %p132, %p133
    %p135 = pneg %p134
    // Predicated region
    $region25: #{vat3d_loss.4} parent=5 // pred_check
      _
    $region26: #{vat3d_loss.4} parent=5 // pred_check_branch
      %137 = sbr.rel (%p134) target = $region28
    $region27: #{vat3d_loss.4} parent=5 // pred_region
      %s138 = ssub.s32 %s8, 1
      %s139 = smul.u32 4, %s18
      %p140 = scmp.lt.s32.totalorder %s17, 1
      %s141 = scalar_select %p140, %s17, 1
      %p142 = scmp.lt.s32.totalorder %s139, 3
      %s143 = scalar_select %p142, %s139, 3
      %s144 = smul.addr %s141, 4
      %s145 = sadd.s32 %s143, %s144
      %s146 = smul.addr %s145, 8
      %s147 = scalar_lea.vmem %s0, %s146
      %p148 = pneg %p48
      %p149 = pneg %p45
      %p150 = pneg %p69
      %p151 = pneg %p66
      %p152 = pneg %p97
      %p153 = pneg %p94
      %s154 = smul.u32 4, %s18
      %p155 = scmp.lt.s32.totalorder %s17, 1
      %s156 = scalar_select %p155, %s17, 1
      %p157 = scmp.lt.s32.totalorder %s154, 3
      %s158 = scalar_select %p157, %s154, 3
      %s159 = smul.addr %s156, 4
      %s160 = sadd.s32 %s158, %s159
      %s161 = smul.addr %s160, 8
      %s162 = scalar_lea.vmem %s2, %s161
      %s163 = smul.u32 4, %s18
      %p164 = scmp.lt.s32.totalorder %s17, 1
      %s165 = scalar_select %p164, %s17, 1
      %p166 = scmp.lt.s32.totalorder %s163, 3
      %s167 = scalar_select %p166, %s163, 3
      %s168 = smul.addr %s165, 4
      %s169 = sadd.s32 %s167, %s168
      %s170 = smul.addr %s169, 8
      %s171 = scalar_lea.vmem %s0, %s170
      %s172 = smul.u32 4, %s18
      %s173 = smul.u32 4, %s18
      %p174 = scmp.lt.s32.totalorder %s17, 1
      %s175 = scalar_select %p174, %s17, 1
      %p176 = scmp.lt.s32.totalorder %s173, 3
      %s177 = scalar_select %p176, %s173, 3
      %s178 = smul.addr %s175, 4
      %s179 = sadd.s32 %s177, %s178
      %s180 = smul.addr %s179, 8
      %s181 = scalar_lea.vmem %s2, %s180
      %s182 = smul.u32 4, %s18
      %v183 = vld [vmem:[%s1] sm:$0xff]
      %v184 = vld [vmem:[%s171] sm:$0xff]
      %v185 = vld [vmem:[%s171 + $0x8] sm:$0xff]
      %v186 = vld [vmem:[%s171 + $0x10] sm:$0xff]
      %v187 = vld [vmem:[%s171 + $0x18] sm:$0xff]
      %vm188 = vcmask 64512
      %v190 = vsel %vm188, %v183, 0
      %192 = vmatpush.msra.mxu0 0.0
      %193 = vmatpush.msra.mxu0 0.0
      %194 = vmatpush.msra.mxu0 0.0
      %195 = vmatpush.msra.mxu0 0.0
      %196 = vmatpush.msra.mxu0 0.0
      %197 = vmatpush.msra.mxu0 0.0
      %198 = vmatpush.msra.mxu0 0.0
      %199 = vmatpush.msra.mxu0 0.0
      %200 = vmatpush.msra.mxu0 0.0
      %201 = vmatpush.msra.mxu0 0.0
      %202 = vmatpush.msra.mxu0 0.0
      %203 = vmatpush.msra.mxu0 0.0
      %204 = vmatpush.msra.mxu0 0.0
      %205 = vmatpush.msra.mxu0 0.0
      %206 = vmatpush.msra.mxu0 0.0
      %207 = vmatpush.msra.mxu0 %v184
      %208 = vmatmul.f32.gmra.mxu0 %v190
      %v209 = vpop.f32.mrf.mxu0
      %v210 = vadd.f32 0.0, %v209
      %211 = vdwg.mxu0
      %212 = vmatpush.msra.mxu0 0.0
      %213 = vmatpush.msra.mxu0 0.0
      %214 = vmatpush.msra.mxu0 0.0
      %215 = vmatpush.msra.mxu0 0.0
      %216 = vmatpush.msra.mxu0 0.0
      %217 = vmatpush.msra.mxu0 0.0
      %218 = vmatpush.msra.mxu0 0.0
      %219 = vmatpush.msra.mxu0 0.0
      %220 = vmatpush.msra.mxu0 0.0
      %221 = vmatpush.msra.mxu0 0.0
      %222 = vmatpush.msra.mxu0 0.0
      %223 = vmatpush.msra.mxu0 0.0
      %224 = vmatpush.msra.mxu0 0.0
      %225 = vmatpush.msra.mxu0 0.0
      %226 = vmatpush.msra.mxu0 0.0
      %227 = vmatpush.msra.mxu0 %v185
      %228 = vmatmul.f32.gmra.mxu0 %v190
      %v229 = vpop.f32.mrf.mxu0
      %v230 = vadd.f32 0.0, %v229
      %231 = vdwg.mxu0
      %232 = vmatpush.msra.mxu0 0.0
      %233 = vmatpush.msra.mxu0 0.0
      %234 = vmatpush.msra.mxu0 0.0
      %235 = vmatpush.msra.mxu0 0.0
      %236 = vmatpush.msra.mxu0 0.0
      %237 = vmatpush.msra.mxu0 0.0
      %238 = vmatpush.msra.mxu0 0.0
      %239 = vmatpush.msra.mxu0 0.0
      %240 = vmatpush.msra.mxu0 0.0
      %241 = vmatpush.msra.mxu0 0.0
      %242 = vmatpush.msra.mxu0 0.0
      %243 = vmatpush.msra.mxu0 0.0
      %244 = vmatpush.msra.mxu0 0.0
      %245 = vmatpush.msra.mxu0 0.0
      %246 = vmatpush.msra.mxu0 0.0
      %247 = vmatpush.msra.mxu0 %v186
      %248 = vmatmul.f32.gmra.mxu0 %v190
      %v249 = vpop.f32.mrf.mxu0
      %v250 = vadd.f32 0.0, %v249
      %251 = vdwg.mxu0
      %252 = vmatpush.msra.mxu0 0.0
      %253 = vmatpush.msra.mxu0 0.0
      %254 = vmatpush.msra.mxu0 0.0
      %255 = vmatpush.msra.mxu0 0.0
      %256 = vmatpush.msra.mxu0 0.0
      %257 = vmatpush.msra.mxu0 0.0
      %258 = vmatpush.msra.mxu0 0.0
      %259 = vmatpush.msra.mxu0 0.0
      %260 = vmatpush.msra.mxu0 0.0
      %261 = vmatpush.msra.mxu0 0.0
      %262 = vmatpush.msra.mxu0 0.0
      %263 = vmatpush.msra.mxu0 0.0
      %264 = vmatpush.msra.mxu0 0.0
      %265 = vmatpush.msra.mxu0 0.0
      %266 = vmatpush.msra.mxu0 0.0
      %267 = vmatpush.msra.mxu0 %v187
      %268 = vmatmul.f32.gmra.mxu0 %v190
      %v269 = vpop.f32.mrf.mxu0
      %v270 = vadd.f32 0.0, %v269
      %271 = vdwg.mxu0
      %v272 = vrot.slane %v210, 4
      %v273 = vmax.f32 %v210, %v272
      %v274 = vrot.slane %v273, 2
      %v275 = vmax.f32 %v273, %v274
      %v276 = vrot.slane %v275, 1
      %v277 = vmax.f32 %v275, %v276
      %v278 = vrot.slane %v230, 4
      %v279 = vmax.f32 %v230, %v278
      %v280 = vrot.slane %v279, 2
      %v281 = vmax.f32 %v279, %v280
      %v282 = vrot.slane %v281, 1
      %v283 = vmax.f32 %v281, %v282
      %v284 = vrot.slane %v250, 4
      %v285 = vmax.f32 %v250, %v284
      %v286 = vrot.slane %v285, 2
      %v287 = vmax.f32 %v285, %v286
      %v288 = vrot.slane %v287, 1
      %v289 = vmax.f32 %v287, %v288
      %v290 = vrot.slane %v270, 4
      %v291 = vmax.f32 %v270, %v290
      %v292 = vrot.slane %v291, 2
      %v293 = vmax.f32 %v291, %v292
      %v294 = vrot.slane %v293, 1
      %v295 = vmax.f32 %v293, %v294
      %v296 = vsub.f32 %v210, %v277
      %v297 = vsub.f32 %v230, %v283
      %v298 = vsub.f32 %v250, %v289
      %v299 = vsub.f32 %v270, %v295
      %v300 = vmul.f32 %v296, 1.442695
      %v301 = vpow.pop %v300
      %v302 = vmul.f32 %v297, 1.442695
      %v303 = vpow.pop %v302
      %v304 = vmul.f32 %v298, 1.442695
      %v305 = vpow.pop %v304
      %v306 = vmul.f32 %v299, 1.442695
      %v307 = vpow.pop %v306
      %v308 = vrot.slane %v301, 4
      %v309 = vadd.f32 %v301, %v308
      %v310 = vrot.slane %v309, 2
      %v311 = vadd.f32 %v309, %v310
      %v312 = vrot.slane %v311, 1
      %v313 = vadd.f32 %v311, %v312
      %v314 = vrot.slane %v303, 4
      %v315 = vadd.f32 %v303, %v314
      %v316 = vrot.slane %v315, 2
      %v317 = vadd.f32 %v315, %v316
      %v318 = vrot.slane %v317, 1
      %v319 = vadd.f32 %v317, %v318
      %v320 = vrot.slane %v305, 4
      %v321 = vadd.f32 %v305, %v320
      %v322 = vrot.slane %v321, 2
      %v323 = vadd.f32 %v321, %v322
      %v324 = vrot.slane %v323, 1
      %v325 = vadd.f32 %v323, %v324
      %v326 = vrot.slane %v307, 4
      %v327 = vadd.f32 %v307, %v326
      %v328 = vrot.slane %v327, 2
      %v329 = vadd.f32 %v327, %v328
      %v330 = vrot.slane %v329, 1
      %v331 = vadd.f32 %v329, %v330
      %v332 = vrcp.pop %v313
      %v333 = vrcp.pop %v319
      %v334 = vrcp.pop %v325
      %v335 = vrcp.pop %v331
      %v336 = vmul.f32 %v301, %v332
      %v337 = vmul.f32 %v303, %v333
      %v338 = vmul.f32 %v305, %v334
      %v339 = vmul.f32 %v307, %v335
      %340 = vst [vmem:[%s181] sm:$0xff] %v336
      %341 = vst [vmem:[%s181 + $0x8] sm:$0xff] %v337
      %342 = vst [vmem:[%s181 + $0x10] sm:$0xff] %v338
      %343 = vst [vmem:[%s181 + $0x18] sm:$0xff] %v339
      %s344 = smul.u32 4, %s18
      %p345 = scmp.lt.s32.totalorder %s17, 1
      %s346 = scalar_select %p345, %s17, 1
      %p347 = scmp.lt.s32.totalorder %s344, 3
      %s348 = scalar_select %p347, %s344, 3
      %s349 = smul.addr %s346, 4
      %s350 = sadd.s32 %s348, %s349
      %s351 = smul.addr %s350, 8
      %s352 = scalar_lea.vmem %s2, %s351
      // Predicated region
      $region29: #{vat3d_loss.4} parent=27 // pred_check
        %p353 = pneg %p94
      $region30: #{vat3d_loss.4} parent=27 // pred_check_branch
        %355 = sbr.rel (%p353) target = $region32
      $region31: #{vat3d_loss.4} parent=27 // pred_region
        %s356 = smul.u32 4, %s18
      $region32: #{vat3d_loss.4} parent=27 // pred_fallthru
        _
    $region28: #{vat3d_loss.4} parent=5 // pred_fallthru
      _
    %p357 = scmp.le.s32.totalorder 2, %s8
    // Predicated region
    $region33: #{vat3d_loss.4} parent=5 // pred_check
      %p358 = pneg %p357
    $region34: #{vat3d_loss.4} parent=5 // pred_check_branch
      %360 = sbr.rel (%p358) target = $region36
    $region35: #{vat3d_loss.4} parent=5 // pred_region
      %s361 = ssub.s32 %s8, 2
      // Predicated region
      $region37: #{vat3d_loss.4} parent=35 // pred_check
        %p362 = pneg %p100
      $region38: #{vat3d_loss.4} parent=35 // pred_check_branch
        %364 = sbr.rel (%p362) target = $region40
      $region39: #{vat3d_loss.4} parent=35 // pred_region
        %s365 = smul.u32 4, %s20
        %p366 = scmp.lt.s32.totalorder %s19, 1
        %s367 = scalar_select %p366, %s19, 1
        %p368 = scmp.lt.s32.totalorder %s365, 3
        %s369 = scalar_select %p368, %s365, 3
        %s370 = smul.addr %s367, 4
        %s371 = sadd.s32 %s369, %s370
        %s372 = smul.addr %s371, 8
        %s373 = scalar_lea.vmem %s2, %s372
      $region40: #{vat3d_loss.4} parent=35 // pred_fallthru
        _
    $region36: #{vat3d_loss.4} parent=5 // pred_fallthru
      _
  $region6: #{vat3d_loss.4} parent=0 // loop_footer
    %s12 = sadd.s32 1, %s8
  $region7: #{vat3d_loss.4} parent=0 // loop_footer_branch
    %7 = sbr.rel target = $region3
  $region8: #{vat3d_loss.4} parent=0 // loop_exit
    _

// kernel: vat3d_loss.5
$region0: #{vat3d_loss.5}
  #allocation0 [shape = 'u32[]', space=smem, size = 0x4, offset = 0x4, fixed_abs, tag = 'smem constant byte address 0x4 - core index']
  #allocation1 [shape = 'u32[72,128]{1,0:T(1,128)}', space=vmem, size = 0x9000, scoped, tag = 'internal scratch']
  #allocation2 [shape = 'f32[3]{0:T(128)}', space=smem, size = 0x200, scoped, tag = 'scratch operand']
  %s0 = inlined_call_operand.vmem [shape: f32[2], index: 0, kind: input, shape index: {}]
  %s1 = inlined_call_operand.vmem [shape: f32[2,8,512], index: 1, kind: input, shape index: {}]
  %s2 = inlined_call_operand.vmem [shape: f32[2,8,512], index: 2, kind: input, shape index: {}]
  %s3 = inlined_call_operand.vmem [shape: f32[8,8], index: 3, kind: input, shape index: {}]
  %s4 = inlined_call_operand.vmem [shape: f32[2,8,512], index: 4, kind: input, shape index: {}]
  %s5 = inlined_call_operand.vmem [shape: f32[2,8,512], index: 5, kind: output, shape index: {0}]
  %s6 = inlined_call_operand.vmem [shape: f32[2,8,128], index: 6, kind: output, shape index: {1}]
  %7 = xla_tuple %s5, %s6
  %s8 = sld [smem:[#allocation0]]
  $region73: #{vat3d_loss.5} parent=0
    _
  %s10 = ssub.s32 1, %s8
  %s11 = scalar_select 0, %s10, %s8
  $region1: #{vat3d_loss.5} parent=0
    #allocation3 [shape = 'u8[512]{0}', space=smem, size = 0x200, scoped, tag = 'input window, operand 0, single buffered']
    #allocation4 [shape = 's32[2]{0}', space=sflag, size = 0x8, scoped, tag = 'scoped memory for vat3d_loss.5']
    %12 = vsyncpa [#allocation4], 0
    loop: start=0, step=1, limit=4
    $region2: #{vat3d_loss.5} parent=1 // loop_pre_header
      _
    $region3: #{vat3d_loss.5} parent=1 // loop_header
      %s14 = sphi 0, %s18
      %p15 = scmp.ge.s32.totalorder %s14, 4
      %s21 = sphi 0, %s33
      %s22 = sphi 0, %s29
      %s23 = sphi 0, %s21
      %s24 = sphi 0, %s22
      %s25 = sphi 0, %s23
      %s26 = sphi 0, %s24
      %s34 = sphi 0, %s34
      %s36 = sphi 0, %s34
      %s37 = sphi 0, %s36
      %s51 = sphi 0, %s37
      %s59 = sphi 0, %s61
      %s62 = sphi 0, %s59
      %s63 = sphi 0, %s62
      %s79 = sphi 0, %s63
      %s87 = sphi 0, %s89
      %s90 = sphi 0, %s87
      %s91 = sphi 0, %s90
      %s107 = sphi 0, %s91
      %s111 = sphi 0, %s111
      %s113 = sphi 0, %s111
      %s114 = sphi 0, %s113
      %s128 = sphi 0, %s114
      %s136 = sphi 0, %s138
      %s139 = sphi 0, %s136
      %s140 = sphi 0, %s139
      %s156 = sphi 0, %s140
      %s164 = sphi 0, %s166
      %s167 = sphi 0, %s164
      %s168 = sphi 0, %s167
      %s184 = sphi 0, %s168
      %s190 = sphi 0, %s192
      %s193 = sphi 0, %s190
      %s194 = sphi 0, %s193
      %s210 = sphi 0, %s194
    $region4: #{vat3d_loss.5} parent=1 // loop_header_branch
      %17 = sbr.rel (%p15) target = $region8
    $region5: #{vat3d_loss.5} parent=1 // loop_body
      %s19 = ssub.s32 %s14, 1
      %s20 = ssub.s32 %s14, 2
      %s27 = sadd.s32 1, %s22
      %p28 = scmp.ge.s32.totalorder %s27, 1
      %s29 = scalar_select %p28, 0, %s27
      %s30 = sadd.s32 1, %s21
      %s31 = scalar_select %p28, %s30, %s21
      %p32 = scmp.ge.s32.totalorder %s31, 2
      %s33 = scalar_select %p32, 0, %s31
      %s35 = sadd.s32 %s34, 1
      %p38 = scmp.eq.s32.totalorder %s14, 1
      %p39 = scmp.ne.s32.totalorder %s34, %s36
      %p40 = scmp.eq.s32.totalorder %s14, 0
      %p41 = por %p39, %p40
      %p42 = scmp.ne.s32.totalorder %s34, %s36
      %p43 = scmp.eq.s32.totalorder %s19, 1
      %p44 = por %p42, %p43
      %p45 = scmp.ne.s32.totalorder %s36, %s37
      %p46 = scmp.eq.s32.totalorder %s19, 0
      %p47 = por %p45, %p46
      %p48 = scmp.ne.s32.totalorder %s36, %s37
      %p49 = scmp.eq.s32.totalorder %s20, 1
      %p50 = por %p48, %p49
      %p52 = scmp.ne.s32.totalorder %s37, %s51
      %p53 = scmp.eq.s32.totalorder %s20, 0
      %p54 = por %p52, %p53
      %s55 = ssub.s32 %s21, %s33
      %s56 = ssub.s32 %s22, %s29
      %s57 = sor.u32 %s55, %s56
      %p58 = scmp.eq.s32.totalorder %s57, 0
      %s60 = sadd.s32 %s59, 1
      %s61 = scalar_select %p58, %s59, %s60
      %p64 = pneg %p58
      %p65 = scmp.eq.s32.totalorder %s14, 1
      %p66 = por %p64, %p65
      %p67 = scmp.ne.s32.totalorder %s59, %s62
      %p68 = scmp.eq.s32.totalorder %s14, 0
      %p69 = por %p67, %p68
      %p70 = scmp.ne.s32.totalorder %s59, %s62
      %p71 = scmp.eq.s32.totalorder %s19, 1
      %p72 = por %p70, %p71
      %p73 = scmp.ne.s32.totalorder %s62, %s63
      %p74 = scmp.eq.s32.totalorder %s19, 0
      %p75 = por %p73, %p74
      %p76 = scmp.ne.s32.totalorder %s62, %s63
      %p77 = scmp.eq.s32.totalorder %s20, 1
      %p78 = por %p76, %p77
      %p80 = scmp.ne.s32.totalorder %s63, %s79
      %p81 = scmp.eq.s32.totalorder %s20, 0
      %p82 = por %p80, %p81
      %s83 = ssub.s32 %s21, %s33
      %s84 = ssub.s32 %s22, %s29
      %s85 = sor.u32 %s83, %s84
      %p86 = scmp.eq.s32.totalorder %s85, 0
      %s88 = sadd.s32 %s87, 1
      %s89 = scalar_select %p86, %s87, %s88
      %p92 = pneg %p86
      %p93 = scmp.eq.s32.totalorder %s14, 1
      %p94 = por %p92, %p93
      %p95 = scmp.ne.s32.totalorder %s87, %s90
      %p96 = scmp.eq.s32.totalorder %s14, 0
      %p97 = por %p95, %p96
      %p98 = scmp.ne.s32.totalorder %s87, %s90
      %p99 = scmp.eq.s32.totalorder %s19, 1
      %p100 = por %p98, %p99
      %p101 = scmp.ne.s32.totalorder %s90, %s91
      %p102 = scmp.eq.s32.totalorder %s19, 0
      %p103 = por %p101, %p102
      %p104 = scmp.ne.s32.totalorder %s90, %s91
      %p105 = scmp.eq.s32.totalorder %s20, 1
      %p106 = por %p104, %p105
      %p108 = scmp.ne.s32.totalorder %s91, %s107
      %p109 = scmp.eq.s32.totalorder %s20, 0
      %p110 = por %p108, %p109
      %s112 = sadd.s32 %s111, 1
      %p115 = scmp.eq.s32.totalorder %s14, 1
      %p116 = scmp.ne.s32.totalorder %s111, %s113
      %p117 = scmp.eq.s32.totalorder %s14, 0
      %p118 = por %p116, %p117
      %p119 = scmp.ne.s32.totalorder %s111, %s113
      %p120 = scmp.eq.s32.totalorder %s19, 1
      %p121 = por %p119, %p120
      %p122 = scmp.ne.s32.totalorder %s113, %s114
      %p123 = scmp.eq.s32.totalorder %s19, 0
      %p124 = por %p122, %p123
      %p125 = scmp.ne.s32.totalorder %s113, %s114
      %p126 = scmp.eq.s32.totalorder %s20, 1
      %p127 = por %p125, %p126
      %p129 = scmp.ne.s32.totalorder %s114, %s128
      %p130 = scmp.eq.s32.totalorder %s20, 0
      %p131 = por %p129, %p130
      %s132 = ssub.s32 %s21, %s33
      %s133 = ssub.s32 %s22, %s29
      %s134 = sor.u32 %s132, %s133
      %p135 = scmp.eq.s32.totalorder %s134, 0
      %s137 = sadd.s32 %s136, 1
      %s138 = scalar_select %p135, %s136, %s137
      %p141 = pneg %p135
      %p142 = scmp.eq.s32.totalorder %s14, 1
      %p143 = por %p141, %p142
      %p144 = scmp.ne.s32.totalorder %s136, %s139
      %p145 = scmp.eq.s32.totalorder %s14, 0
      %p146 = por %p144, %p145
      %p147 = scmp.ne.s32.totalorder %s136, %s139
      %p148 = scmp.eq.s32.totalorder %s19, 1
      %p149 = por %p147, %p148
      %p150 = scmp.ne.s32.totalorder %s139, %s140
      %p151 = scmp.eq.s32.totalorder %s19, 0
      %p152 = por %p150, %p151
      %p153 = scmp.ne.s32.totalorder %s139, %s140
      %p154 = scmp.eq.s32.totalorder %s20, 1
      %p155 = por %p153, %p154
      %p157 = scmp.ne.s32.totalorder %s140, %s156
      %p158 = scmp.eq.s32.totalorder %s20, 0
      %p159 = por %p157, %p158
      %s160 = ssub.s32 %s21, %s33
      %s161 = ssub.s32 %s22, %s29
      %s162 = sor.u32 %s160, %s161
      %p163 = scmp.eq.s32.totalorder %s162, 0
      %s165 = sadd.s32 %s164, 1
      %s166 = scalar_select %p163, %s164, %s165
      %p169 = pneg %p163
      %p170 = scmp.eq.s32.totalorder %s14, 1
      %p171 = por %p169, %p170
      %p172 = scmp.ne.s32.totalorder %s164, %s167
      %p173 = scmp.eq.s32.totalorder %s14, 0
      %p174 = por %p172, %p173
      %p175 = scmp.ne.s32.totalorder %s164, %s167
      %p176 = scmp.eq.s32.totalorder %s19, 1
      %p177 = por %p175, %p176
      %p178 = scmp.ne.s32.totalorder %s167, %s168
      %p179 = scmp.eq.s32.totalorder %s19, 0
      %p180 = por %p178, %p179
      %p181 = scmp.ne.s32.totalorder %s167, %s168
      %p182 = scmp.eq.s32.totalorder %s20, 1
      %p183 = por %p181, %p182
      %p185 = scmp.ne.s32.totalorder %s168, %s184
      %p186 = scmp.eq.s32.totalorder %s20, 0
      %p187 = por %p185, %p186
      %s188 = ssub.s32 %s21, %s33
      %p189 = scmp.eq.s32.totalorder %s188, 0
      %s191 = sadd.s32 %s190, 1
      %s192 = scalar_select %p189, %s190, %s191
      %p195 = pneg %p189
      %p196 = scmp.eq.s32.totalorder %s14, 1
      %p197 = por %p195, %p196
      %p198 = scmp.ne.s32.totalorder %s190, %s193
      %p199 = scmp.eq.s32.totalorder %s14, 0
      %p200 = por %p198, %p199
      %p201 = scmp.ne.s32.totalorder %s190, %s193
      %p202 = scmp.eq.s32.totalorder %s19, 1
      %p203 = por %p201, %p202
      %p204 = scmp.ne.s32.totalorder %s193, %s194
      %p205 = scmp.eq.s32.totalorder %s19, 0
      %p206 = por %p204, %p205
      %p207 = scmp.ne.s32.totalorder %s193, %s194
      %p208 = scmp.eq.s32.totalorder %s20, 1
      %p209 = por %p207, %p208
      %p211 = scmp.ne.s32.totalorder %s194, %s210
      %p212 = scmp.eq.s32.totalorder %s20, 0
      %p213 = por %p211, %p212
      %p214 = scmp.le.s32.totalorder 1, %s14
      %p215 = scmp.lt.s32.totalorder %s14, 3
      %p216 = pnand %p214, %p215
      %p217 = pneg %p216
      // Predicated region
      $region9: #{vat3d_loss.5} parent=5 // pred_check
        _
      $region10: #{vat3d_loss.5} parent=5 // pred_check_branch
        %219 = sbr.rel (%p216) target = $region12
      $region11: #{vat3d_loss.5} parent=5 // pred_region
        %s220 = ssub.s32 %s14, 1
        // Predicated region
        $region13: #{vat3d_loss.5} parent=11 // pred_check
          %p221 = pneg %p47
        $region14: #{vat3d_loss.5} parent=11 // pred_check_branch
          %223 = sbr.rel (%p221) target = $region16
        $region15: #{vat3d_loss.5} parent=11 // pred_region
          %225 = vsyncadd [#allocation4], 0
          %s227 = sshll.u32 %s0, 4
          %s228 = int_to_ptr.vmem [resolvable:$true] %s227
          %230 = dma.vmem_to_smem %s228, 16, [#allocation3], [#allocation4]
        $region16: #{vat3d_loss.5} parent=11 // pred_fallthru
          _
        // Predicated region
        $region17: #{vat3d_loss.5} parent=11 // pred_check
          %p231 = pneg %p124
        $region18: #{vat3d_loss.5} parent=11 // pred_check_branch
          %233 = sbr.rel (%p231) target = $region20
        $region19: #{vat3d_loss.5} parent=11 // pred_region
          _
        $region20: #{vat3d_loss.5} parent=11 // pred_fallthru
          _
      $region12: #{vat3d_loss.5} parent=5 // pred_fallthru
        _
      %p234 = scmp.lt.s32.totalorder %s14, 2
      // Predicated region
      $region21: #{vat3d_loss.5} parent=5 // pred_check
        %p235 = pneg %p234
      $region22: #{vat3d_loss.5} parent=5 // pred_check_branch
        %237 = sbr.rel (%p235) target = $region24
      $region23: #{vat3d_loss.5} parent=5 // pred_region
        // Predicated region
        $region25: #{vat3d_loss.5} parent=23 // pred_check
          %p238 = pneg %p69
        $region26: #{vat3d_loss.5} parent=23 // pred_check_branch
          %240 = sbr.rel (%p238) target = $region28
        $region27: #{vat3d_loss.5} parent=23 // pred_region
          %s241 = smul.u32 4, %s22
          %p242 = scmp.lt.s32.totalorder %s21, 1
          %s243 = scalar_select %p242, %s21, 1
          %p244 = scmp.lt.s32.totalorder %s241, 3
          %s245 = scalar_select %p244, %s241, 3
          %s246 = smul.addr %s243, 4
          %s247 = sadd.s32 %s245, %s246
          %s248 = smul.addr %s247, 8
          %s249 = scalar_lea.vmem %s1, %s248
          %s250 = smul.u32 4, %s22
        $region28: #{vat3d_loss.5} parent=23 // pred_fallthru
          _
        // Predicated region
        $region29: #{vat3d_loss.5} parent=23 // pred_check
          %p251 = pneg %p97
        $region30: #{vat3d_loss.5} parent=23 // pred_check_branch
          %253 = sbr.rel (%p251) target = $region32
        $region31: #{vat3d_loss.5} parent=23 // pred_region
          %s254 = smul.u32 4, %s22
          %p255 = scmp.lt.s32.totalorder %s21, 1
          %s256 = scalar_select %p255, %s21, 1
          %p257 = scmp.lt.s32.totalorder %s254, 3
          %s258 = scalar_select %p257, %s254, 3
          %s259 = smul.addr %s256, 4
          %s260 = sadd.s32 %s258, %s259
          %s261 = smul.addr %s260, 8
          %s262 = scalar_lea.vmem %s2, %s261
          %s263 = smul.u32 4, %s22
        $region32: #{vat3d_loss.5} parent=23 // pred_fallthru
          _
        // Predicated region
        $region33: #{vat3d_loss.5} parent=23 // pred_check
          %p264 = pneg %p146
        $region34: #{vat3d_loss.5} parent=23 // pred_check_branch
          %266 = sbr.rel (%p264) target = $region36
        $region35: #{vat3d_loss.5} parent=23 // pred_region
          %s267 = smul.u32 4, %s22
          %p268 = scmp.lt.s32.totalorder %s21, 1
          %s269 = scalar_select %p268, %s21, 1
          %p270 = scmp.lt.s32.totalorder %s267, 3
          %s271 = scalar_select %p270, %s267, 3
          %s272 = smul.addr %s269, 4
          %s273 = sadd.s32 %s271, %s272
          %s274 = smul.addr %s273, 8
          %s275 = scalar_lea.vmem %s4, %s274
          %s276 = smul.u32 4, %s22
        $region36: #{vat3d_loss.5} parent=23 // pred_fallthru
          _
      $region24: #{vat3d_loss.5} parent=5 // pred_fallthru
        _
      %p277 = scmp.le.s32.totalorder 1, %s14
      %p278 = scmp.lt.s32.totalorder %s14, 3
      %p279 = pnand %p277, %p278
      %p280 = pneg %p279
      // Predicated region
      $region37: #{vat3d_loss.5} parent=5 // pred_check
        _
      $region38: #{vat3d_loss.5} parent=5 // pred_check_branch
        %282 = sbr.rel (%p279) target = $region40
      $region39: #{vat3d_loss.5} parent=5 // pred_region
        %s283 = ssub.s32 %s14, 1
        // Predicated region
        $region41: #{vat3d_loss.5} parent=39 // pred_check
          %p284 = pneg %p47
        $region42: #{vat3d_loss.5} parent=39 // pred_check_branch
          %286 = sbr.rel (%p284) target = $region44
        $region43: #{vat3d_loss.5} parent=39 // pred_region
          %288 = dma.done [#allocation4], 16
        $region44: #{vat3d_loss.5} parent=39 // pred_fallthru
          _
        %289 = sfence
        %p290 = pneg %p47
        %p291 = pneg %p44
        %s292 = smul.u32 4, %s24
        %p293 = scmp.lt.s32.totalorder %s23, 1
        %s294 = scalar_select %p293, %s23, 1
        %p295 = scmp.lt.s32.totalorder %s292, 3
        %s296 = scalar_select %p295, %s292, 3
        %s297 = smul.addr %s294, 4
        %s298 = sadd.s32 %s296, %s297
        %s299 = smul.addr %s298, 8
        %s300 = scalar_lea.vmem %s1, %s299
        %p301 = pneg %p75
        %p302 = pneg %p72
        %s303 = smul.u32 4, %s24
        %p304 = scmp.lt.s32.totalorder %s23, 1
        %s305 = scalar_select %p304, %s23, 1
        %p306 = scmp.lt.s32.totalorder %s303, 3
        %s307 = scalar_select %p306, %s303, 3
        %s308 = smul.addr %s305, 4
        %s309 = sadd.s32 %s307, %s308
        %s310 = smul.addr %s309, 8
        %s311 = scalar_lea.vmem %s2, %s310
        %p312 = pneg %p103
        %p313 = pneg %p100
        %p314 = pneg %p124
        %p315 = pneg %p121
        %s316 = smul.u32 4, %s24
        %p317 = scmp.lt.s32.totalorder %s23, 1
        %s318 = scalar_select %p317, %s23, 1
        %p319 = scmp.lt.s32.totalorder %s316, 3
        %s320 = scalar_select %p319, %s316, 3
        %s321 = smul.addr %s318, 4
        %s322 = sadd.s32 %s320, %s321
        %s323 = smul.addr %s322, 8
        %s324 = scalar_lea.vmem %s4, %s323
        %p325 = pneg %p152
        %p326 = pneg %p149
        %p327 = pneg %p180
        %p328 = pneg %p177
        %s329 = smul.u32 4, %s24
        %p330 = scmp.lt.s32.totalorder %s23, 1
        %s331 = scalar_select %p330, %s23, 1
        %p332 = scmp.lt.s32.totalorder %s329, 3
        %s333 = scalar_select %p332, %s329, 3
        %s334 = smul.addr %s331, 4
        %s335 = sadd.s32 %s333, %s334
        %s336 = smul.addr %s335, 8
        %s337 = scalar_lea.vmem %s5, %s336
        %p338 = pneg %p206
        %p339 = pneg %p203
        %p340 = scmp.lt.s32.totalorder %s23, 1
        %s341 = scalar_select %p340, %s23, 1
        %s342 = smul.addr %s341, 8
        %s343 = scalar_lea.vmem %s6, %s342
        %s344 = smul.u32 4, %s24
        %p345 = scmp.lt.s32.totalorder %s23, 1
        %s346 = scalar_select %p345, %s23, 1
        %p347 = scmp.lt.s32.totalorder %s344, 3
        %s348 = scalar_select %p347, %s344, 3
        %s349 = smul.addr %s346, 4
        %s350 = sadd.s32 %s348, %s349
        %s351 = smul.addr %s350, 8
        %s352 = scalar_lea.vmem %s1, %s351
        %s353 = smul.u32 4, %s24
        %s354 = smul.u32 4, %s24
        %p355 = scmp.lt.s32.totalorder %s23, 1
        %s356 = scalar_select %p355, %s23, 1
        %p357 = scmp.lt.s32.totalorder %s354, 3
        %s358 = scalar_select %p357, %s354, 3
        %s359 = smul.addr %s356, 4
        %s360 = sadd.s32 %s358, %s359
        %s361 = smul.addr %s360, 8
        %s362 = scalar_lea.vmem %s2, %s361
        %s363 = smul.u32 4, %s24
        %s364 = smul.u32 4, %s24
        %p365 = scmp.lt.s32.totalorder %s23, 1
        %s366 = scalar_select %p365, %s23, 1
        %p367 = scmp.lt.s32.totalorder %s364, 3
        %s368 = scalar_select %p367, %s364, 3
        %s369 = smul.addr %s366, 4
        %s370 = sadd.s32 %s368, %s369
        %s371 = smul.addr %s370, 8
        %s372 = scalar_lea.vmem %s4, %s371
        %s373 = smul.u32 4, %s24
        %s374 = smul.u32 4, %s24
        %p375 = scmp.lt.s32.totalorder %s23, 1
        %s376 = scalar_select %p375, %s23, 1
        %p377 = scmp.lt.s32.totalorder %s374, 3
        %s378 = scalar_select %p377, %s374, 3
        %s379 = smul.addr %s376, 4
        %s380 = sadd.s32 %s378, %s379
        %s381 = smul.addr %s380, 8
        %s382 = scalar_lea.vmem %s5, %s381
        %s383 = smul.u32 4, %s24
        %p384 = scmp.lt.s32.totalorder %s23, 1
        %s385 = scalar_select %p384, %s23, 1
        %s386 = smul.addr %s385, 8
        %s387 = scalar_lea.vmem %s6, %s386
        %p388 = scmp.eq.s32.totalorder %s24, 0
        // Predicated region
        $region45: #{vat3d_loss.5} parent=39 // pred_check
          %p389 = pneg %p388
        $region46: #{vat3d_loss.5} parent=39 // pred_check_branch
          %391 = sbr.rel (%p389) target = $region48
        $region47: #{vat3d_loss.5} parent=39 // pred_region
          %s392 = scalar_lea.smem [#allocation2], 0
          %393 = sst [smem:[%s392]] 0.0
          %s394 = scalar_lea.smem [#allocation2], 1
          %395 = sst [smem:[%s394]] 0.0
          %s396 = scalar_lea.smem [#allocation2], 2
          %397 = sst [smem:[%s396]] 0.0
        $region48: #{vat3d_loss.5} parent=39 // pred_fallthru
          _
        %v398 = vld [vmem:[%s352] sm:$0xff]
        %v399 = vld [vmem:[%s352 + $0x8] sm:$0xff]
        %v400 = vld [vmem:[%s352 + $0x10] sm:$0xff]
        %v401 = vld [vmem:[%s352 + $0x18] sm:$0xff]
        %s402 = sld [smem:[#allocation3 + %s23]]
        %v403 = vld [vmem:[%s362] sm:$0xff]
        %v404 = vld [vmem:[%s362 + $0x8] sm:$0xff]
        %v405 = vld [vmem:[%s362 + $0x10] sm:$0xff]
        %v406 = vld [vmem:[%s362 + $0x18] sm:$0xff]
        %v407 = vstv %s402
        %v408 = vmul.f32 %v407, %v403
        %v409 = vmul.f32 %v407, %v404
        %v410 = vmul.f32 %v407, %v405
        %v411 = vmul.f32 %v407, %v406
        %v412 = vadd.f32 %v398, %v408
        %v413 = vadd.f32 %v399, %v409
        %v414 = vadd.f32 %v400, %v410
        %v415 = vadd.f32 %v401, %v411
        %v416 = vld [vmem:[%s3] sm:$0xff]
        %vm417 = vcmask 64512
        %v419 = vsel %vm417, %v416, 0
        %421 = vmatpush.msra.mxu0 0.0
        %422 = vmatpush.msra.mxu0 0.0
        %423 = vmatpush.msra.mxu0 0.0
        %424 = vmatpush.msra.mxu0 0.0
        %425 = vmatpush.msra.mxu0 0.0
        %426 = vmatpush.msra.mxu0 0.0
        %427 = vmatpush.msra.mxu0 0.0
        %428 = vmatpush.msra.mxu0 0.0
        %429 = vmatpush.msra.mxu0 0.0
        %430 = vmatpush.msra.mxu0 0.0
        %431 = vmatpush.msra.mxu0 0.0
        %432 = vmatpush.msra.mxu0 0.0
        %433 = vmatpush.msra.mxu0 0.0
        %434 = vmatpush.msra.mxu0 0.0
        %435 = vmatpush.msra.mxu0 0.0
        %436 = vmatpush.msra.mxu0 %v412
        %437 = vmatmul.f32.gmra.mxu0 %v419
        %v438 = vpop.f32.mrf.mxu0
        %v439 = vadd.f32 0.0, %v438
        %440 = vdwg.mxu0
        %441 = vmatpush.msra.mxu0 0.0
        %442 = vmatpush.msra.mxu0 0.0
        %443 = vmatpush.msra.mxu0 0.0
        %444 = vmatpush.msra.mxu0 0.0
        %445 = vmatpush.msra.mxu0 0.0
        %446 = vmatpush.msra.mxu0 0.0
        %447 = vmatpush.msra.mxu0 0.0
        %448 = vmatpush.msra.mxu0 0.0
        %449 = vmatpush.msra.mxu0 0.0
        %450 = vmatpush.msra.mxu0 0.0
        %451 = vmatpush.msra.mxu0 0.0
        %452 = vmatpush.msra.mxu0 0.0
        %453 = vmatpush.msra.mxu0 0.0
        %454 = vmatpush.msra.mxu0 0.0
        %455 = vmatpush.msra.mxu0 0.0
        %456 = vmatpush.msra.mxu0 %v413
        %457 = vmatmul.f32.gmra.mxu0 %v419
        %v458 = vpop.f32.mrf.mxu0
        %v459 = vadd.f32 0.0, %v458
        %460 = vdwg.mxu0
        %461 = vmatpush.msra.mxu0 0.0
        %462 = vmatpush.msra.mxu0 0.0
        %463 = vmatpush.msra.mxu0 0.0
        %464 = vmatpush.msra.mxu0 0.0
        %465 = vmatpush.msra.mxu0 0.0
        %466 = vmatpush.msra.mxu0 0.0
        %467 = vmatpush.msra.mxu0 0.0
        %468 = vmatpush.msra.mxu0 0.0
        %469 = vmatpush.msra.mxu0 0.0
        %470 = vmatpush.msra.mxu0 0.0
        %471 = vmatpush.msra.mxu0 0.0
        %472 = vmatpush.msra.mxu0 0.0
        %473 = vmatpush.msra.mxu0 0.0
        %474 = vmatpush.msra.mxu0 0.0
        %475 = vmatpush.msra.mxu0 0.0
        %476 = vmatpush.msra.mxu0 %v414
        %477 = vmatmul.f32.gmra.mxu0 %v419
        %v478 = vpop.f32.mrf.mxu0
        %v479 = vadd.f32 0.0, %v478
        %480 = vdwg.mxu0
        %481 = vmatpush.msra.mxu0 0.0
        %482 = vmatpush.msra.mxu0 0.0
        %483 = vmatpush.msra.mxu0 0.0
        %484 = vmatpush.msra.mxu0 0.0
        %485 = vmatpush.msra.mxu0 0.0
        %486 = vmatpush.msra.mxu0 0.0
        %487 = vmatpush.msra.mxu0 0.0
        %488 = vmatpush.msra.mxu0 0.0
        %489 = vmatpush.msra.mxu0 0.0
        %490 = vmatpush.msra.mxu0 0.0
        %491 = vmatpush.msra.mxu0 0.0
        %492 = vmatpush.msra.mxu0 0.0
        %493 = vmatpush.msra.mxu0 0.0
        %494 = vmatpush.msra.mxu0 0.0
        %495 = vmatpush.msra.mxu0 0.0
        %496 = vmatpush.msra.mxu0 %v415
        %497 = vmatmul.f32.gmra.mxu0 %v419
        %v498 = vpop.f32.mrf.mxu0
        %v499 = vadd.f32 0.0, %v498
        %500 = vdwg.mxu0
        %v501 = vrot.slane %v439, 4
        %v502 = vmax.f32 %v439, %v501
        %v503 = vrot.slane %v502, 2
        %v504 = vmax.f32 %v502, %v503
        %v505 = vrot.slane %v504, 1
        %v506 = vmax.f32 %v504, %v505
        %v507 = vrot.slane %v459, 4
        %v508 = vmax.f32 %v459, %v507
        %v509 = vrot.slane %v508, 2
        %v510 = vmax.f32 %v508, %v509
        %v511 = vrot.slane %v510, 1
        %v512 = vmax.f32 %v510, %v511
        %v513 = vrot.slane %v479, 4
        %v514 = vmax.f32 %v479, %v513
        %v515 = vrot.slane %v514, 2
        %v516 = vmax.f32 %v514, %v515
        %v517 = vrot.slane %v516, 1
        %v518 = vmax.f32 %v516, %v517
        %v519 = vrot.slane %v499, 4
        %v520 = vmax.f32 %v499, %v519
        %v521 = vrot.slane %v520, 2
        %v522 = vmax.f32 %v520, %v521
        %v523 = vrot.slane %v522, 1
        %v524 = vmax.f32 %v522, %v523
        %v525 = vsub.f32 %v439, %v506
        %v526 = vsub.f32 %v459, %v512
        %v527 = vsub.f32 %v479, %v518
        %v528 = vsub.f32 %v499, %v524
        %v529 = vmul.f32 %v525, 1.442695
        %v530 = vpow.pop %v529
        %v531 = vmul.f32 %v526, 1.442695
        %v532 = vpow.pop %v531
        %v533 = vmul.f32 %v527, 1.442695
        %v534 = vpow.pop %v533
        %v535 = vmul.f32 %v528, 1.442695
        %v536 = vpow.pop %v535
        %v537 = vrot.slane %v530, 4
        %v538 = vadd.f32 %v530, %v537
        %v539 = vrot.slane %v538, 2
        %v540 = vadd.f32 %v538, %v539
        %v541 = vrot.slane %v540, 1
        %v542 = vadd.f32 %v540, %v541
        %v543 = vrot.slane %v532, 4
        %v544 = vadd.f32 %v532, %v543
        %v545 = vrot.slane %v544, 2
        %v546 = vadd.f32 %v544, %v545
        %v547 = vrot.slane %v546, 1
        %v548 = vadd.f32 %v546, %v547
        %v549 = vrot.slane %v534, 4
        %v550 = vadd.f32 %v534, %v549
        %v551 = vrot.slane %v550, 2
        %v552 = vadd.f32 %v550, %v551
        %v553 = vrot.slane %v552, 1
        %v554 = vadd.f32 %v552, %v553
        %v555 = vrot.slane %v536, 4
        %v556 = vadd.f32 %v536, %v555
        %v557 = vrot.slane %v556, 2
        %v558 = vadd.f32 %v556, %v557
        %v559 = vrot.slane %v558, 1
        %v560 = vadd.f32 %v558, %v559
        %v561 = vrcp.pop %v542
        %v562 = vrcp.pop %v548
        %v563 = vrcp.pop %v554
        %v564 = vrcp.pop %v560
        %v565 = vmul.f32 %v530, %v561
        %v566 = vmul.f32 %v532, %v562
        %v567 = vmul.f32 %v534, %v563
        %v568 = vmul.f32 %v536, %v564
        %569 = vst [vmem:[%s382] sm:$0xff] %v565
        %570 = vst [vmem:[%s382 + $0x8] sm:$0xff] %v566
        %571 = vst [vmem:[%s382 + $0x10] sm:$0xff] %v567
        %572 = vst [vmem:[%s382 + $0x18] sm:$0xff] %v568
        %v573 = vld [vmem:[%s372] sm:$0xff]
        %v574 = vld [vmem:[%s372 + $0x8] sm:$0xff]
        %v575 = vld [vmem:[%s372 + $0x10] sm:$0xff]
        %v576 = vld [vmem:[%s372 + $0x18] sm:$0xff]
        %s577 = sld [smem:[#allocation2]]
        %v578 = vmul.f32 %v565, %v573
        %v579 = vmul.f32 %v566, %v574
        %v580 = vmul.f32 %v567, %v575
        %v581 = vmul.f32 %v568, %v576
        %v582 = vadd.f32 %v578, %v579
        %v583 = vadd.f32 %v582, %v580
        %v584 = vadd.f32 %v583, %v581
        %585 = vadd.xlane.f32.xlu0 %v584
        %v586 = vpop.xlane.xlu0 %585
        %v587 = vrot.slane %v586, 4
        %v588 = vadd.f32 %v586, %v587
        %v589 = vrot.slane %v588, 2
        %v590 = vadd.f32 %v588, %v589
        %v591 = vrot.slane %v590, 1
        %v592 = vadd.f32 %v590, %v591
        %s593 = vtos %v592
        %s594 = sadd.f32 %s577, %s593
        %s595 = scalar_lea.smem [#allocation2], 0
        %596 = sst [smem:[%s595]] %s594
        %s597 = sld [smem:[#allocation2 + $0x1]]
        %v598 = vadd.f32 %v565, %v566
        %v599 = vadd.f32 %v598, %v567
        %v600 = vadd.f32 %v599, %v568
        %601 = vadd.xlane.f32.xlu0 %v600
        %v602 = vpop.xlane.xlu0 %601
        %v603 = vrot.slane %v602, 4
        %v604 = vadd.f32 %v602, %v603
        %v605 = vrot.slane %v604, 2
        %v606 = vadd.f32 %v604, %v605
        %v607 = vrot.slane %v606, 1
        %v608 = vadd.f32 %v606, %v607
        %s609 = vtos %v608
        %s610 = sadd.f32 %s597, %s609
        %s611 = scalar_lea.smem [#allocation2], 1
        %612 = sst [smem:[%s611]] %s610
        %s613 = sld [smem:[#allocation2 + $0x2]]
        %v614 = vadd.f32 %v573, %v574
        %v615 = vadd.f32 %v614, %v575
        %v616 = vadd.f32 %v615, %v576
        %617 = vadd.xlane.f32.xlu0 %v616
        %v618 = vpop.xlane.xlu0 %617
        %v619 = vrot.slane %v618, 4
        %v620 = vadd.f32 %v618, %v619
        %v621 = vrot.slane %v620, 2
        %v622 = vadd.f32 %v620, %v621
        %v623 = vrot.slane %v622, 1
        %v624 = vadd.f32 %v622, %v623
        %s625 = vtos %v624
        %s626 = sadd.f32 %s613, %s625
        %s627 = scalar_lea.smem [#allocation2], 2
        %628 = sst [smem:[%s627]] %s626
        // Predicated region
        $region49: #{vat3d_loss.5} parent=39 // pred_check
          %p629 = pneg %p388
        $region50: #{vat3d_loss.5} parent=39 // pred_check_branch
          %631 = sbr.rel (%p629) target = $region52
        $region51: #{vat3d_loss.5} parent=39 // pred_region
          %v632 = vlaneseq
          %v633 = vand.u32 %v632, 127
          %vm634 = vcmp.eq.s32.totalorder %v633, 0
          %s635 = sld [smem:[#allocation2]]
          %vm636 = vcmp.eq.s32.totalorder %v633, 1
          %s637 = sld [smem:[#allocation2 + $0x1]]
          %vm638 = vcmp.eq.s32.totalorder %v633, 2
          %s639 = sld [smem:[#allocation2 + $0x2]]
          %v640 = vstv %s639
          %v641 = vsel %vm638, %v640, 0.0
          %v642 = vstv %s637
          %v643 = vsel %vm636, %v642, %v641
          %v644 = vstv %s635
          %v645 = vsel %vm634, %v644, %v643
          %646 = vst [vmem:[%s387] sm:$0xff] %v645
        $region52: #{vat3d_loss.5} parent=39 // pred_fallthru
          _
        %s647 = smul.u32 4, %s24
        %p648 = scmp.lt.s32.totalorder %s23, 1
        %s649 = scalar_select %p648, %s23, 1
        %p650 = scmp.lt.s32.totalorder %s647, 3
        %s651 = scalar_select %p650, %s647, 3
        %s652 = smul.addr %s649, 4
        %s653 = sadd.s32 %s651, %s652
        %s654 = smul.addr %s653, 8
        %s655 = scalar_lea.vmem %s5, %s654
        %p656 = scmp.lt.s32.totalorder %s23, 1
        %s657 = scalar_select %p656, %s23, 1
        %s658 = smul.addr %s657, 8
        %s659 = scalar_lea.vmem %s6, %s658
        // Predicated region
        $region53: #{vat3d_loss.5} parent=39 // pred_check
          %p660 = pneg %p177
        $region54: #{vat3d_loss.5} parent=39 // pred_check_branch
          %662 = sbr.rel (%p660) target = $region56
        $region55: #{vat3d_loss.5} parent=39 // pred_region
          %s663 = smul.u32 4, %s24
        $region56: #{vat3d_loss.5} parent=39 // pred_fallthru
          _
        // Predicated region
        $region57: #{vat3d_loss.5} parent=39 // pred_check
          %p664 = pneg %p203
        $region58: #{vat3d_loss.5} parent=39 // pred_check_branch
          %666 = sbr.rel (%p664) target = $region60
        $region59: #{vat3d_loss.5} parent=39 // pred_region
          _
        $region60: #{vat3d_loss.5} parent=39 // pred_fallthru
          _
      $region40: #{vat3d_loss.5} parent=5 // pred_fallthru
        _
      %p667 = scmp.le.s32.totalorder 2, %s14
      // Predicated region
      $region61: #{vat3d_loss.5} parent=5 // pred_check
        %p668 = pneg %p667
      $region62: #{vat3d_loss.5} parent=5 // pred_check_branch
        %670 = sbr.rel (%p668) target = $region64
      $region63: #{vat3d_loss.5} parent=5 // pred_region
        %s671 = ssub.s32 %s14, 2
        // Predicated region
        $region65: #{vat3d_loss.5} parent=63 // pred_check
          %p672 = pneg %p183
        $region66: #{vat3d_loss.5} parent=63 // pred_check_branch
          %674 = sbr.rel (%p672) target = $region68
        $region67: #{vat3d_loss.5} parent=63 // pred_region
          %s675 = smul.u32 4, %s26
          %p676 = scmp.lt.s32.totalorder %s25, 1
          %s677 = scalar_select %p676, %s25, 1
          %p678 = scmp.lt.s32.totalorder %s675, 3
          %s679 = scalar_select %p678, %s675, 3
          %s680 = smul.addr %s677, 4
          %s681 = sadd.s32 %s679, %s680
          %s682 = smul.addr %s681, 8
          %s683 = scalar_lea.vmem %s5, %s682
        $region68: #{vat3d_loss.5} parent=63 // pred_fallthru
          _
        // Predicated region
        $region69: #{vat3d_loss.5} parent=63 // pred_check
          %p684 = pneg %p209
        $region70: #{vat3d_loss.5} parent=63 // pred_check_branch
          %686 = sbr.rel (%p684) target = $region72
        $region71: #{vat3d_loss.5} parent=63 // pred_region
          %p687 = scmp.lt.s32.totalorder %s25, 1
          %s688 = scalar_select %p687, %s25, 1
          %s689 = smul.addr %s688, 8
          %s690 = scalar_lea.vmem %s6, %s689
        $region72: #{vat3d_loss.5} parent=63 // pred_fallthru
          _
      $region64: #{vat3d_loss.5} parent=5 // pred_fallthru
        _
    $region6: #{vat3d_loss.5} parent=1 // loop_footer
      %s18 = sadd.s32 1, %s14
    $region7: #{vat3d_loss.5} parent=1 // loop_footer_branch
      %13 = sbr.rel target = $region3
    $region8: #{vat3d_loss.5} parent=1 // loop_exit
      _
    %691 = vsyncpa [#allocation4], 1
    %s692 = scalar_lea.sflag [#allocation4], 1
    %693 = vsyncpa %s692, 1

// kernel: vat3d_loss.6
$region0: #{vat3d_loss.6}
  #allocation0 [shape = 'u32[]', space=smem, size = 0x4, offset = 0x4, fixed_abs, tag = 'smem constant byte address 0x4 - core index']
  #allocation1 [shape = 'u32[72,128]{1,0:T(1,128)}', space=vmem, size = 0x9000, scoped, tag = 'internal scratch']
  #allocation2 [shape = 'f32[1]{0:T(128)}', space=smem, size = 0x200, scoped, tag = 'scratch operand']
  %s0 = inlined_call_operand.vmem [shape: f32[2], index: 0, kind: input, shape index: {}]
  %s1 = inlined_call_operand.vmem [shape: f32[2,8,512], index: 1, kind: input, shape index: {}]
  %s2 = inlined_call_operand.vmem [shape: f32[2,8,512], index: 2, kind: input, shape index: {}]
  %s3 = inlined_call_operand.vmem [shape: f32[8,8], index: 3, kind: input, shape index: {}]
  %s4 = inlined_call_operand.vmem [shape: f32[2,8,512], index: 4, kind: output, shape index: {0}]
  %s5 = inlined_call_operand.vmem [shape: f32[2,8,128], index: 5, kind: output, shape index: {1}]
  %6 = xla_tuple %s4, %s5
  %s7 = sld [smem:[#allocation0]]
  $region69: #{vat3d_loss.6} parent=0
    _
  %s9 = ssub.s32 1, %s7
  %s10 = scalar_select 0, %s9, %s7
  $region1: #{vat3d_loss.6} parent=0
    #allocation3 [shape = 'u8[512]{0}', space=smem, size = 0x200, scoped, tag = 'input window, operand 0, single buffered']
    #allocation4 [shape = 's32[2]{0}', space=sflag, size = 0x8, scoped, tag = 'scoped memory for vat3d_loss.6']
    %11 = vsyncpa [#allocation4], 0
    loop: start=0, step=1, limit=4
    $region2: #{vat3d_loss.6} parent=1 // loop_pre_header
      _
    $region3: #{vat3d_loss.6} parent=1 // loop_header
      %s13 = sphi 0, %s17
      %p14 = scmp.ge.s32.totalorder %s13, 4
      %s20 = sphi 0, %s32
      %s21 = sphi 0, %s28
      %s22 = sphi 0, %s20
      %s23 = sphi 0, %s21
      %s24 = sphi 0, %s22
      %s25 = sphi 0, %s23
      %s33 = sphi 0, %s33
      %s35 = sphi 0, %s33
      %s36 = sphi 0, %s35
      %s50 = sphi 0, %s36
      %s58 = sphi 0, %s60
      %s61 = sphi 0, %s58
      %s62 = sphi 0, %s61
      %s78 = sphi 0, %s62
      %s86 = sphi 0, %s88
      %s89 = sphi 0, %s86
      %s90 = sphi 0, %s89
      %s106 = sphi 0, %s90
      %s110 = sphi 0, %s110
      %s112 = sphi 0, %s110
      %s113 = sphi 0, %s112
      %s127 = sphi 0, %s113
      %s135 = sphi 0, %s137
      %s138 = sphi 0, %s135
      %s139 = sphi 0, %s138
      %s155 = sphi 0, %s139
      %s161 = sphi 0, %s163
      %s164 = sphi 0, %s161
      %s165 = sphi 0, %s164
      %s181 = sphi 0, %s165
    $region4: #{vat3d_loss.6} parent=1 // loop_header_branch
      %16 = sbr.rel (%p14) target = $region8
    $region5: #{vat3d_loss.6} parent=1 // loop_body
      %s18 = ssub.s32 %s13, 1
      %s19 = ssub.s32 %s13, 2
      %s26 = sadd.s32 1, %s21
      %p27 = scmp.ge.s32.totalorder %s26, 1
      %s28 = scalar_select %p27, 0, %s26
      %s29 = sadd.s32 1, %s20
      %s30 = scalar_select %p27, %s29, %s20
      %p31 = scmp.ge.s32.totalorder %s30, 2
      %s32 = scalar_select %p31, 0, %s30
      %s34 = sadd.s32 %s33, 1
      %p37 = scmp.eq.s32.totalorder %s13, 1
      %p38 = scmp.ne.s32.totalorder %s33, %s35
      %p39 = scmp.eq.s32.totalorder %s13, 0
      %p40 = por %p38, %p39
      %p41 = scmp.ne.s32.totalorder %s33, %s35
      %p42 = scmp.eq.s32.totalorder %s18, 1
      %p43 = por %p41, %p42
      %p44 = scmp.ne.s32.totalorder %s35, %s36
      %p45 = scmp.eq.s32.totalorder %s18, 0
      %p46 = por %p44, %p45
      %p47 = scmp.ne.s32.totalorder %s35, %s36
      %p48 = scmp.eq.s32.totalorder %s19, 1
      %p49 = por %p47, %p48
      %p51 = scmp.ne.s32.totalorder %s36, %s50
      %p52 = scmp.eq.s32.totalorder %s19, 0
      %p53 = por %p51, %p52
      %s54 = ssub.s32 %s20, %s32
      %s55 = ssub.s32 %s21, %s28
      %s56 = sor.u32 %s54, %s55
      %p57 = scmp.eq.s32.totalorder %s56, 0
      %s59 = sadd.s32 %s58, 1
      %s60 = scalar_select %p57, %s58, %s59
      %p63 = pneg %p57
      %p64 = scmp.eq.s32.totalorder %s13, 1
      %p65 = por %p63, %p64
      %p66 = scmp.ne.s32.totalorder %s58, %s61
      %p67 = scmp.eq.s32.totalorder %s13, 0
      %p68 = por %p66, %p67
      %p69 = scmp.ne.s32.totalorder %s58, %s61
      %p70 = scmp.eq.s32.totalorder %s18, 1
      %p71 = por %p69, %p70
      %p72 = scmp.ne.s32.totalorder %s61, %s62
      %p73 = scmp.eq.s32.totalorder %s18, 0
      %p74 = por %p72, %p73
      %p75 = scmp.ne.s32.totalorder %s61, %s62
      %p76 = scmp.eq.s32.totalorder %s19, 1
      %p77 = por %p75, %p76
      %p79 = scmp.ne.s32.totalorder %s62, %s78
      %p80 = scmp.eq.s32.totalorder %s19, 0
      %p81 = por %p79, %p80
      %s82 = ssub.s32 %s20, %s32
      %s83 = ssub.s32 %s21, %s28
      %s84 = sor.u32 %s82, %s83
      %p85 = scmp.eq.s32.totalorder %s84, 0
      %s87 = sadd.s32 %s86, 1
      %s88 = scalar_select %p85, %s86, %s87
      %p91 = pneg %p85
      %p92 = scmp.eq.s32.totalorder %s13, 1
      %p93 = por %p91, %p92
      %p94 = scmp.ne.s32.totalorder %s86, %s89
      %p95 = scmp.eq.s32.totalorder %s13, 0
      %p96 = por %p94, %p95
      %p97 = scmp.ne.s32.totalorder %s86, %s89
      %p98 = scmp.eq.s32.totalorder %s18, 1
      %p99 = por %p97, %p98
      %p100 = scmp.ne.s32.totalorder %s89, %s90
      %p101 = scmp.eq.s32.totalorder %s18, 0
      %p102 = por %p100, %p101
      %p103 = scmp.ne.s32.totalorder %s89, %s90
      %p104 = scmp.eq.s32.totalorder %s19, 1
      %p105 = por %p103, %p104
      %p107 = scmp.ne.s32.totalorder %s90, %s106
      %p108 = scmp.eq.s32.totalorder %s19, 0
      %p109 = por %p107, %p108
      %s111 = sadd.s32 %s110, 1
      %p114 = scmp.eq.s32.totalorder %s13, 1
      %p115 = scmp.ne.s32.totalorder %s110, %s112
      %p116 = scmp.eq.s32.totalorder %s13, 0
      %p117 = por %p115, %p116
      %p118 = scmp.ne.s32.totalorder %s110, %s112
      %p119 = scmp.eq.s32.totalorder %s18, 1
      %p120 = por %p118, %p119
      %p121 = scmp.ne.s32.totalorder %s112, %s113
      %p122 = scmp.eq.s32.totalorder %s18, 0
      %p123 = por %p121, %p122
      %p124 = scmp.ne.s32.totalorder %s112, %s113
      %p125 = scmp.eq.s32.totalorder %s19, 1
      %p126 = por %p124, %p125
      %p128 = scmp.ne.s32.totalorder %s113, %s127
      %p129 = scmp.eq.s32.totalorder %s19, 0
      %p130 = por %p128, %p129
      %s131 = ssub.s32 %s20, %s32
      %s132 = ssub.s32 %s21, %s28
      %s133 = sor.u32 %s131, %s132
      %p134 = scmp.eq.s32.totalorder %s133, 0
      %s136 = sadd.s32 %s135, 1
      %s137 = scalar_select %p134, %s135, %s136
      %p140 = pneg %p134
      %p141 = scmp.eq.s32.totalorder %s13, 1
      %p142 = por %p140, %p141
      %p143 = scmp.ne.s32.totalorder %s135, %s138
      %p144 = scmp.eq.s32.totalorder %s13, 0
      %p145 = por %p143, %p144
      %p146 = scmp.ne.s32.totalorder %s135, %s138
      %p147 = scmp.eq.s32.totalorder %s18, 1
      %p148 = por %p146, %p147
      %p149 = scmp.ne.s32.totalorder %s138, %s139
      %p150 = scmp.eq.s32.totalorder %s18, 0
      %p151 = por %p149, %p150
      %p152 = scmp.ne.s32.totalorder %s138, %s139
      %p153 = scmp.eq.s32.totalorder %s19, 1
      %p154 = por %p152, %p153
      %p156 = scmp.ne.s32.totalorder %s139, %s155
      %p157 = scmp.eq.s32.totalorder %s19, 0
      %p158 = por %p156, %p157
      %s159 = ssub.s32 %s20, %s32
      %p160 = scmp.eq.s32.totalorder %s159, 0
      %s162 = sadd.s32 %s161, 1
      %s163 = scalar_select %p160, %s161, %s162
      %p166 = pneg %p160
      %p167 = scmp.eq.s32.totalorder %s13, 1
      %p168 = por %p166, %p167
      %p169 = scmp.ne.s32.totalorder %s161, %s164
      %p170 = scmp.eq.s32.totalorder %s13, 0
      %p171 = por %p169, %p170
      %p172 = scmp.ne.s32.totalorder %s161, %s164
      %p173 = scmp.eq.s32.totalorder %s18, 1
      %p174 = por %p172, %p173
      %p175 = scmp.ne.s32.totalorder %s164, %s165
      %p176 = scmp.eq.s32.totalorder %s18, 0
      %p177 = por %p175, %p176
      %p178 = scmp.ne.s32.totalorder %s164, %s165
      %p179 = scmp.eq.s32.totalorder %s19, 1
      %p180 = por %p178, %p179
      %p182 = scmp.ne.s32.totalorder %s165, %s181
      %p183 = scmp.eq.s32.totalorder %s19, 0
      %p184 = por %p182, %p183
      %p185 = scmp.le.s32.totalorder 1, %s13
      %p186 = scmp.lt.s32.totalorder %s13, 3
      %p187 = pnand %p185, %p186
      %p188 = pneg %p187
      // Predicated region
      $region9: #{vat3d_loss.6} parent=5 // pred_check
        _
      $region10: #{vat3d_loss.6} parent=5 // pred_check_branch
        %190 = sbr.rel (%p187) target = $region12
      $region11: #{vat3d_loss.6} parent=5 // pred_region
        %s191 = ssub.s32 %s13, 1
        // Predicated region
        $region13: #{vat3d_loss.6} parent=11 // pred_check
          %p192 = pneg %p46
        $region14: #{vat3d_loss.6} parent=11 // pred_check_branch
          %194 = sbr.rel (%p192) target = $region16
        $region15: #{vat3d_loss.6} parent=11 // pred_region
          %196 = vsyncadd [#allocation4], 0
          %s198 = sshll.u32 %s0, 4
          %s199 = int_to_ptr.vmem [resolvable:$true] %s198
          %201 = dma.vmem_to_smem %s199, 16, [#allocation3], [#allocation4]
        $region16: #{vat3d_loss.6} parent=11 // pred_fallthru
          _
        // Predicated region
        $region17: #{vat3d_loss.6} parent=11 // pred_check
          %p202 = pneg %p123
        $region18: #{vat3d_loss.6} parent=11 // pred_check_branch
          %204 = sbr.rel (%p202) target = $region20
        $region19: #{vat3d_loss.6} parent=11 // pred_region
          _
        $region20: #{vat3d_loss.6} parent=11 // pred_fallthru
          _
      $region12: #{vat3d_loss.6} parent=5 // pred_fallthru
        _
      %p205 = scmp.lt.s32.totalorder %s13, 2
      // Predicated region
      $region21: #{vat3d_loss.6} parent=5 // pred_check
        %p206 = pneg %p205
      $region22: #{vat3d_loss.6} parent=5 // pred_check_branch
        %208 = sbr.rel (%p206) target = $region24
      $region23: #{vat3d_loss.6} parent=5 // pred_region
        // Predicated region
        $region25: #{vat3d_loss.6} parent=23 // pred_check
          %p209 = pneg %p68
        $region26: #{vat3d_loss.6} parent=23 // pred_check_branch
          %211 = sbr.rel (%p209) target = $region28
        $region27: #{vat3d_loss.6} parent=23 // pred_region
          %s212 = smul.u32 4, %s21
          %p213 = scmp.lt.s32.totalorder %s20, 1
          %s214 = scalar_select %p213, %s20, 1
          %p215 = scmp.lt.s32.totalorder %s212, 3
          %s216 = scalar_select %p215, %s212, 3
          %s217 = smul.addr %s214, 4
          %s218 = sadd.s32 %s216, %s217
          %s219 = smul.addr %s218, 8
          %s220 = scalar_lea.vmem %s1, %s219
          %s221 = smul.u32 4, %s21
        $region28: #{vat3d_loss.6} parent=23 // pred_fallthru
          _
        // Predicated region
        $region29: #{vat3d_loss.6} parent=23 // pred_check
          %p222 = pneg %p96
        $region30: #{vat3d_loss.6} parent=23 // pred_check_branch
          %224 = sbr.rel (%p222) target = $region32
        $region31: #{vat3d_loss.6} parent=23 // pred_region
          %s225 = smul.u32 4, %s21
          %p226 = scmp.lt.s32.totalorder %s20, 1
          %s227 = scalar_select %p226, %s20, 1
          %p228 = scmp.lt.s32.totalorder %s225, 3
          %s229 = scalar_select %p228, %s225, 3
          %s230 = smul.addr %s227, 4
          %s231 = sadd.s32 %s229, %s230
          %s232 = smul.addr %s231, 8
          %s233 = scalar_lea.vmem %s2, %s232
          %s234 = smul.u32 4, %s21
        $region32: #{vat3d_loss.6} parent=23 // pred_fallthru
          _
      $region24: #{vat3d_loss.6} parent=5 // pred_fallthru
        _
      %p235 = scmp.le.s32.totalorder 1, %s13
      %p236 = scmp.lt.s32.totalorder %s13, 3
      %p237 = pnand %p235, %p236
      %p238 = pneg %p237
      // Predicated region
      $region33: #{vat3d_loss.6} parent=5 // pred_check
        _
      $region34: #{vat3d_loss.6} parent=5 // pred_check_branch
        %240 = sbr.rel (%p237) target = $region36
      $region35: #{vat3d_loss.6} parent=5 // pred_region
        %s241 = ssub.s32 %s13, 1
        // Predicated region
        $region37: #{vat3d_loss.6} parent=35 // pred_check
          %p242 = pneg %p46
        $region38: #{vat3d_loss.6} parent=35 // pred_check_branch
          %244 = sbr.rel (%p242) target = $region40
        $region39: #{vat3d_loss.6} parent=35 // pred_region
          %246 = dma.done [#allocation4], 16
        $region40: #{vat3d_loss.6} parent=35 // pred_fallthru
          _
        %247 = sfence
        %p248 = pneg %p46
        %p249 = pneg %p43
        %s250 = smul.u32 4, %s23
        %p251 = scmp.lt.s32.totalorder %s22, 1
        %s252 = scalar_select %p251, %s22, 1
        %p253 = scmp.lt.s32.totalorder %s250, 3
        %s254 = scalar_select %p253, %s250, 3
        %s255 = smul.addr %s252, 4
        %s256 = sadd.s32 %s254, %s255
        %s257 = smul.addr %s256, 8
        %s258 = scalar_lea.vmem %s1, %s257
        %p259 = pneg %p74
        %p260 = pneg %p71
        %s261 = smul.u32 4, %s23
        %p262 = scmp.lt.s32.totalorder %s22, 1
        %s263 = scalar_select %p262, %s22, 1
        %p264 = scmp.lt.s32.totalorder %s261, 3
        %s265 = scalar_select %p264, %s261, 3
        %s266 = smul.addr %s263, 4
        %s267 = sadd.s32 %s265, %s266
        %s268 = smul.addr %s267, 8
        %s269 = scalar_lea.vmem %s2, %s268
        %p270 = pneg %p102
        %p271 = pneg %p99
        %p272 = pneg %p123
        %p273 = pneg %p120
        %p274 = pneg %p151
        %p275 = pneg %p148
        %s276 = smul.u32 4, %s23
        %p277 = scmp.lt.s32.totalorder %s22, 1
        %s278 = scalar_select %p277, %s22, 1
        %p279 = scmp.lt.s32.totalorder %s276, 3
        %s280 = scalar_select %p279, %s276, 3
        %s281 = smul.addr %s278, 4
        %s282 = sadd.s32 %s280, %s281
        %s283 = smul.addr %s282, 8
        %s284 = scalar_lea.vmem %s4, %s283
        %p285 = pneg %p177
        %p286 = pneg %p174
        %p287 = scmp.lt.s32.totalorder %s22, 1
        %s288 = scalar_select %p287, %s22, 1
        %s289 = smul.addr %s288, 8
        %s290 = scalar_lea.vmem %s5, %s289
        %s291 = smul.u32 4, %s23
        %p292 = scmp.lt.s32.totalorder %s22, 1
        %s293 = scalar_select %p292, %s22, 1
        %p294 = scmp.lt.s32.totalorder %s291, 3
        %s295 = scalar_select %p294, %s291, 3
        %s296 = smul.addr %s293, 4
        %s297 = sadd.s32 %s295, %s296
        %s298 = smul.addr %s297, 8
        %s299 = scalar_lea.vmem %s1, %s298
        %s300 = smul.u32 4, %s23
        %s301 = smul.u32 4, %s23
        %p302 = scmp.lt.s32.totalorder %s22, 1
        %s303 = scalar_select %p302, %s22, 1
        %p304 = scmp.lt.s32.totalorder %s301, 3
        %s305 = scalar_select %p304, %s301, 3
        %s306 = smul.addr %s303, 4
        %s307 = sadd.s32 %s305, %s306
        %s308 = smul.addr %s307, 8
        %s309 = scalar_lea.vmem %s2, %s308
        %s310 = smul.u32 4, %s23
        %s311 = smul.u32 4, %s23
        %p312 = scmp.lt.s32.totalorder %s22, 1
        %s313 = scalar_select %p312, %s22, 1
        %p314 = scmp.lt.s32.totalorder %s311, 3
        %s315 = scalar_select %p314, %s311, 3
        %s316 = smul.addr %s313, 4
        %s317 = sadd.s32 %s315, %s316
        %s318 = smul.addr %s317, 8
        %s319 = scalar_lea.vmem %s4, %s318
        %s320 = smul.u32 4, %s23
        %p321 = scmp.lt.s32.totalorder %s22, 1
        %s322 = scalar_select %p321, %s22, 1
        %s323 = smul.addr %s322, 8
        %s324 = scalar_lea.vmem %s5, %s323
        %p325 = scmp.eq.s32.totalorder %s23, 0
        // Predicated region
        $region41: #{vat3d_loss.6} parent=35 // pred_check
          %p326 = pneg %p325
        $region42: #{vat3d_loss.6} parent=35 // pred_check_branch
          %328 = sbr.rel (%p326) target = $region44
        $region43: #{vat3d_loss.6} parent=35 // pred_region
          %s329 = scalar_lea.smem [#allocation2], 0
          %330 = sst [smem:[%s329]] 0.0
        $region44: #{vat3d_loss.6} parent=35 // pred_fallthru
          _
        %s331 = sld [smem:[#allocation3]]
        %s332 = sld [smem:[#allocation3 + $0x1]]
        %v333 = vstv %s332
        %v334 = vrcp.pop %v333
        %v335 = vmul.f32 %v333, %v334
        %v336 = vsub.f32 1.0, %v335
        %v337 = vmul.f32 %v334, %v336
        %v338 = vadd.f32 %v334, %v337
        %vm339 = vweird.f32 %v333
        %vm340 = vweird.f32 %v334
        %vm341 = vmor %vm339, %vm340
        %v342 = vsel %vm341, %v334, %v338
        %v343 = vand.u32 2147483647, %v333
        %vm344 = vcmp.eq.f32.partialorder %v343, 8.507059e+37
        %v345 = vand.u32 %v333, 2147483648
        %v346 = vor.u32 1.1754944e-38, %v345
        %v347 = vsel %vm344, %v346, %v342
        %s348 = vtos %v347
        %v349 = vld [vmem:[%s299] sm:$0xff]
        %v350 = vld [vmem:[%s299 + $0x8] sm:$0xff]
        %v351 = vld [vmem:[%s299 + $0x10] sm:$0xff]
        %v352 = vld [vmem:[%s299 + $0x18] sm:$0xff]
        %v353 = vld [vmem:[%s309] sm:$0xff]
        %v354 = vld [vmem:[%s309 + $0x8] sm:$0xff]
        %v355 = vld [vmem:[%s309 + $0x10] sm:$0xff]
        %v356 = vld [vmem:[%s309 + $0x18] sm:$0xff]
        %s357 = smul.f32 %s331, %s348
        %s358 = smul.f32 %s357, %s348
        %s359 = smul.f32 %s348, 2.0
        %v360 = vstv %s359
        %v361 = vmul.f32 %v360, %v353
        %v362 = vmul.f32 %v360, %v354
        %v363 = vmul.f32 %v360, %v355
        %v364 = vmul.f32 %v360, %v356
        %v365 = vstv %s358
        %v366 = vsub.f32 %v365, %v361
        %v367 = vsub.f32 %v365, %v362
        %v368 = vsub.f32 %v365, %v363
        %v369 = vsub.f32 %v365, %v364
        %v370 = vmul.f32 %v366, %v349
        %v371 = vmul.f32 %v367, %v350
        %v372 = vmul.f32 %v368, %v351
        %v373 = vmul.f32 %v369, %v352
        %v374 = vrot.slane %v370, 4
        %v375 = vadd.f32 %v370, %v374
        %v376 = vrot.slane %v375, 2
        %v377 = vadd.f32 %v375, %v376
        %v378 = vrot.slane %v377, 1
        %v379 = vadd.f32 %v377, %v378
        %v380 = vrot.slane %v371, 4
        %v381 = vadd.f32 %v371, %v380
        %v382 = vrot.slane %v381, 2
        %v383 = vadd.f32 %v381, %v382
        %v384 = vrot.slane %v383, 1
        %v385 = vadd.f32 %v383, %v384
        %v386 = vrot.slane %v372, 4
        %v387 = vadd.f32 %v372, %v386
        %v388 = vrot.slane %v387, 2
        %v389 = vadd.f32 %v387, %v388
        %v390 = vrot.slane %v389, 1
        %v391 = vadd.f32 %v389, %v390
        %v392 = vrot.slane %v373, 4
        %v393 = vadd.f32 %v373, %v392
        %v394 = vrot.slane %v393, 2
        %v395 = vadd.f32 %v393, %v394
        %v396 = vrot.slane %v395, 1
        %v397 = vadd.f32 %v395, %v396
        %v398 = vsub.f32 %v366, %v379
        %v399 = vsub.f32 %v367, %v385
        %v400 = vsub.f32 %v368, %v391
        %v401 = vsub.f32 %v369, %v397
        %v402 = vmul.f32 %v349, %v398
        %v403 = vmul.f32 %v350, %v399
        %v404 = vmul.f32 %v351, %v400
        %v405 = vmul.f32 %v352, %v401
        %v406 = vld [vmem:[%s3] sm:$0xff]
        %vm407 = vcmask 64512
        %v409 = vsel %vm407, %v406, 0
        %411 = vmatpush.msra.mxu0 0.0
        %412 = vmatpush.msra.mxu0 0.0
        %413 = vmatpush.msra.mxu0 0.0
        %414 = vmatpush.msra.mxu0 0.0
        %415 = vmatpush.msra.mxu0 0.0
        %416 = vmatpush.msra.mxu0 0.0
        %417 = vmatpush.msra.mxu0 0.0
        %418 = vmatpush.msra.mxu0 0.0
        %419 = vmatpush.msra.mxu0 0.0
        %420 = vmatpush.msra.mxu0 0.0
        %421 = vmatpush.msra.mxu0 0.0
        %422 = vmatpush.msra.mxu0 0.0
        %423 = vmatpush.msra.mxu0 0.0
        %424 = vmatpush.msra.mxu0 0.0
        %425 = vmatpush.msra.mxu0 0.0
        %426 = vmatpush.msra.mxu0 %v402
        %427 = vmatmul.f32.gmra.mxu0 %v409
        %v428 = vpop.f32.mrf.mxu0
        %v429 = vadd.f32 0.0, %v428
        %430 = vdwg.mxu0
        %431 = vmatpush.msra.mxu0 0.0
        %432 = vmatpush.msra.mxu0 0.0
        %433 = vmatpush.msra.mxu0 0.0
        %434 = vmatpush.msra.mxu0 0.0
        %435 = vmatpush.msra.mxu0 0.0
        %436 = vmatpush.msra.mxu0 0.0
        %437 = vmatpush.msra.mxu0 0.0
        %438 = vmatpush.msra.mxu0 0.0
        %439 = vmatpush.msra.mxu0 0.0
        %440 = vmatpush.msra.mxu0 0.0
        %441 = vmatpush.msra.mxu0 0.0
        %442 = vmatpush.msra.mxu0 0.0
        %443 = vmatpush.msra.mxu0 0.0
        %444 = vmatpush.msra.mxu0 0.0
        %445 = vmatpush.msra.mxu0 0.0
        %446 = vmatpush.msra.mxu0 %v403
        %447 = vmatmul.f32.gmra.mxu0 %v409
        %v448 = vpop.f32.mrf.mxu0
        %v449 = vadd.f32 0.0, %v448
        %450 = vdwg.mxu0
        %451 = vmatpush.msra.mxu0 0.0
        %452 = vmatpush.msra.mxu0 0.0
        %453 = vmatpush.msra.mxu0 0.0
        %454 = vmatpush.msra.mxu0 0.0
        %455 = vmatpush.msra.mxu0 0.0
        %456 = vmatpush.msra.mxu0 0.0
        %457 = vmatpush.msra.mxu0 0.0
        %458 = vmatpush.msra.mxu0 0.0
        %459 = vmatpush.msra.mxu0 0.0
        %460 = vmatpush.msra.mxu0 0.0
        %461 = vmatpush.msra.mxu0 0.0
        %462 = vmatpush.msra.mxu0 0.0
        %463 = vmatpush.msra.mxu0 0.0
        %464 = vmatpush.msra.mxu0 0.0
        %465 = vmatpush.msra.mxu0 0.0
        %466 = vmatpush.msra.mxu0 %v404
        %467 = vmatmul.f32.gmra.mxu0 %v409
        %v468 = vpop.f32.mrf.mxu0
        %v469 = vadd.f32 0.0, %v468
        %470 = vdwg.mxu0
        %471 = vmatpush.msra.mxu0 0.0
        %472 = vmatpush.msra.mxu0 0.0
        %473 = vmatpush.msra.mxu0 0.0
        %474 = vmatpush.msra.mxu0 0.0
        %475 = vmatpush.msra.mxu0 0.0
        %476 = vmatpush.msra.mxu0 0.0
        %477 = vmatpush.msra.mxu0 0.0
        %478 = vmatpush.msra.mxu0 0.0
        %479 = vmatpush.msra.mxu0 0.0
        %480 = vmatpush.msra.mxu0 0.0
        %481 = vmatpush.msra.mxu0 0.0
        %482 = vmatpush.msra.mxu0 0.0
        %483 = vmatpush.msra.mxu0 0.0
        %484 = vmatpush.msra.mxu0 0.0
        %485 = vmatpush.msra.mxu0 0.0
        %486 = vmatpush.msra.mxu0 %v405
        %487 = vmatmul.f32.gmra.mxu0 %v409
        %v488 = vpop.f32.mrf.mxu0
        %v489 = vadd.f32 0.0, %v488
        %490 = vdwg.mxu0
        %v491 = vmul.f32 %v429, 10.0
        %v492 = vmul.f32 %v449, 10.0
        %v493 = vmul.f32 %v469, 10.0
        %v494 = vmul.f32 %v489, 10.0
        %495 = vst [vmem:[%s319] sm:$0xff] %v491
        %496 = vst [vmem:[%s319 + $0x8] sm:$0xff] %v492
        %497 = vst [vmem:[%s319 + $0x10] sm:$0xff] %v493
        %498 = vst [vmem:[%s319 + $0x18] sm:$0xff] %v494
        %s499 = sld [smem:[#allocation2]]
        %v500 = vmul.f32 %v491, %v491
        %v501 = vmul.f32 %v492, %v492
        %v502 = vmul.f32 %v493, %v493
        %v503 = vmul.f32 %v494, %v494
        %v504 = vadd.f32 %v500, %v501
        %v505 = vadd.f32 %v504, %v502
        %v506 = vadd.f32 %v505, %v503
        %507 = vadd.xlane.f32.xlu0 %v506
        %v508 = vpop.xlane.xlu0 %507
        %v509 = vrot.slane %v508, 4
        %v510 = vadd.f32 %v508, %v509
        %v511 = vrot.slane %v510, 2
        %v512 = vadd.f32 %v510, %v511
        %v513 = vrot.slane %v512, 1
        %v514 = vadd.f32 %v512, %v513
        %s515 = vtos %v514
        %s516 = sadd.f32 %s499, %s515
        %s517 = scalar_lea.smem [#allocation2], 0
        %518 = sst [smem:[%s517]] %s516
        // Predicated region
        $region45: #{vat3d_loss.6} parent=35 // pred_check
          %p519 = pneg %p325
        $region46: #{vat3d_loss.6} parent=35 // pred_check_branch
          %521 = sbr.rel (%p519) target = $region48
        $region47: #{vat3d_loss.6} parent=35 // pred_region
          %v522 = vlaneseq
          %v523 = vand.u32 %v522, 127
          %vm524 = vcmp.eq.s32.totalorder %v523, 0
          %s525 = sld [smem:[#allocation2]]
          %v526 = vstv %s525
          %v527 = vsel %vm524, %v526, 0.0
          %528 = vst [vmem:[%s324] sm:$0xff] %v527
        $region48: #{vat3d_loss.6} parent=35 // pred_fallthru
          _
        %s529 = smul.u32 4, %s23
        %p530 = scmp.lt.s32.totalorder %s22, 1
        %s531 = scalar_select %p530, %s22, 1
        %p532 = scmp.lt.s32.totalorder %s529, 3
        %s533 = scalar_select %p532, %s529, 3
        %s534 = smul.addr %s531, 4
        %s535 = sadd.s32 %s533, %s534
        %s536 = smul.addr %s535, 8
        %s537 = scalar_lea.vmem %s4, %s536
        %p538 = scmp.lt.s32.totalorder %s22, 1
        %s539 = scalar_select %p538, %s22, 1
        %s540 = smul.addr %s539, 8
        %s541 = scalar_lea.vmem %s5, %s540
        // Predicated region
        $region49: #{vat3d_loss.6} parent=35 // pred_check
          %p542 = pneg %p148
        $region50: #{vat3d_loss.6} parent=35 // pred_check_branch
          %544 = sbr.rel (%p542) target = $region52
        $region51: #{vat3d_loss.6} parent=35 // pred_region
          %s545 = smul.u32 4, %s23
        $region52: #{vat3d_loss.6} parent=35 // pred_fallthru
          _
        // Predicated region
        $region53: #{vat3d_loss.6} parent=35 // pred_check
          %p546 = pneg %p174
        $region54: #{vat3d_loss.6} parent=35 // pred_check_branch
          %548 = sbr.rel (%p546) target = $region56
        $region55: #{vat3d_loss.6} parent=35 // pred_region
          _
        $region56: #{vat3d_loss.6} parent=35 // pred_fallthru
          _
      $region36: #{vat3d_loss.6} parent=5 // pred_fallthru
        _
      %p549 = scmp.le.s32.totalorder 2, %s13
      // Predicated region
      $region57: #{vat3d_loss.6} parent=5 // pred_check
        %p550 = pneg %p549
      $region58: #{vat3d_loss.6} parent=5 // pred_check_branch
        %552 = sbr.rel (%p550) target = $region60
      $region59: #{vat3d_loss.6} parent=5 // pred_region
        %s553 = ssub.s32 %s13, 2
        // Predicated region
        $region61: #{vat3d_loss.6} parent=59 // pred_check
          %p554 = pneg %p154
        $region62: #{vat3d_loss.6} parent=59 // pred_check_branch
          %556 = sbr.rel (%p554) target = $region64
        $region63: #{vat3d_loss.6} parent=59 // pred_region
          %s557 = smul.u32 4, %s25
          %p558 = scmp.lt.s32.totalorder %s24, 1
          %s559 = scalar_select %p558, %s24, 1
          %p560 = scmp.lt.s32.totalorder %s557, 3
          %s561 = scalar_select %p560, %s557, 3
          %s562 = smul.addr %s559, 4
          %s563 = sadd.s32 %s561, %s562
          %s564 = smul.addr %s563, 8
          %s565 = scalar_lea.vmem %s4, %s564
        $region64: #{vat3d_loss.6} parent=59 // pred_fallthru
          _
        // Predicated region
        $region65: #{vat3d_loss.6} parent=59 // pred_check
          %p566 = pneg %p180
        $region66: #{vat3d_loss.6} parent=59 // pred_check_branch
          %568 = sbr.rel (%p566) target = $region68
        $region67: #{vat3d_loss.6} parent=59 // pred_region
          %p569 = scmp.lt.s32.totalorder %s24, 1
          %s570 = scalar_select %p569, %s24, 1
          %s571 = smul.addr %s570, 8
          %s572 = scalar_lea.vmem %s5, %s571
        $region68: #{vat3d_loss.6} parent=59 // pred_fallthru
          _
      $region60: #{vat3d_loss.6} parent=5 // pred_fallthru
        _
    $region6: #{vat3d_loss.6} parent=1 // loop_footer
      %s17 = sadd.s32 1, %s13
    $region7: #{vat3d_loss.6} parent=1 // loop_footer_branch
      %12 = sbr.rel target = $region3
    $region8: #{vat3d_loss.6} parent=1 // loop_exit
      _
    %573 = vsyncpa [#allocation4], 1
    %s574 = scalar_lea.sflag [#allocation4], 1
    %575 = vsyncpa %s574, 1

// kernel: vat3d_loss.7
$region0: #{vat3d_loss.7}
  #allocation0 [shape = 'u32[]', space=smem, size = 0x4, offset = 0x4, fixed_abs, tag = 'smem constant byte address 0x4 - core index']
  #allocation1 [shape = 'u32[72,128]{1,0:T(1,128)}', space=vmem, size = 0x9000, scoped, tag = 'internal scratch']
  #allocation2 [shape = 'f32[3]{0:T(128)}', space=smem, size = 0x200, scoped, tag = 'scratch operand']
  %s0 = inlined_call_operand.vmem [shape: f32[2], index: 0, kind: input, shape index: {}]
  %s1 = inlined_call_operand.vmem [shape: f32[2,8,512], index: 1, kind: input, shape index: {}]
  %s2 = inlined_call_operand.vmem [shape: f32[2,8,512], index: 2, kind: input, shape index: {}]
  %s3 = inlined_call_operand.vmem [shape: f32[8,8], index: 3, kind: input, shape index: {}]
  %s4 = inlined_call_operand.vmem [shape: f32[2,8,512], index: 4, kind: input, shape index: {}]
  %s5 = inlined_call_operand.vmem [shape: f32[2,8,128], index: 5, kind: output, shape index: {}]
  %s6 = sld [smem:[#allocation0]]
  $region65: #{vat3d_loss.7} parent=0
    _
  %s8 = ssub.s32 1, %s6
  %s9 = scalar_select 0, %s8, %s6
  $region1: #{vat3d_loss.7} parent=0
    #allocation3 [shape = 'u8[512]{0}', space=smem, size = 0x200, scoped, tag = 'input window, operand 0, single buffered']
    #allocation4 [shape = 's32[2]{0}', space=sflag, size = 0x8, scoped, tag = 'scoped memory for vat3d_loss.7']
    %10 = vsyncpa [#allocation4], 0
    loop: start=0, step=1, limit=4
    $region2: #{vat3d_loss.7} parent=1 // loop_pre_header
      _
    $region3: #{vat3d_loss.7} parent=1 // loop_header
      %s12 = sphi 0, %s16
      %p13 = scmp.ge.s32.totalorder %s12, 4
      %s19 = sphi 0, %s31
      %s20 = sphi 0, %s27
      %s21 = sphi 0, %s19
      %s22 = sphi 0, %s20
      %s23 = sphi 0, %s21
      %s24 = sphi 0, %s22
      %s32 = sphi 0, %s32
      %s34 = sphi 0, %s32
      %s35 = sphi 0, %s34
      %s49 = sphi 0, %s35
      %s57 = sphi 0, %s59
      %s60 = sphi 0, %s57
      %s61 = sphi 0, %s60
      %s77 = sphi 0, %s61
      %s85 = sphi 0, %s87
      %s88 = sphi 0, %s85
      %s89 = sphi 0, %s88
      %s105 = sphi 0, %s89
      %s109 = sphi 0, %s109
      %s111 = sphi 0, %s109
      %s112 = sphi 0, %s111
      %s126 = sphi 0, %s112
      %s134 = sphi 0, %s136
      %s137 = sphi 0, %s134
      %s138 = sphi 0, %s137
      %s154 = sphi 0, %s138
      %s160 = sphi 0, %s162
      %s163 = sphi 0, %s160
      %s164 = sphi 0, %s163
      %s180 = sphi 0, %s164
    $region4: #{vat3d_loss.7} parent=1 // loop_header_branch
      %15 = sbr.rel (%p13) target = $region8
    $region5: #{vat3d_loss.7} parent=1 // loop_body
      %s17 = ssub.s32 %s12, 1
      %s18 = ssub.s32 %s12, 2
      %s25 = sadd.s32 1, %s20
      %p26 = scmp.ge.s32.totalorder %s25, 1
      %s27 = scalar_select %p26, 0, %s25
      %s28 = sadd.s32 1, %s19
      %s29 = scalar_select %p26, %s28, %s19
      %p30 = scmp.ge.s32.totalorder %s29, 2
      %s31 = scalar_select %p30, 0, %s29
      %s33 = sadd.s32 %s32, 1
      %p36 = scmp.eq.s32.totalorder %s12, 1
      %p37 = scmp.ne.s32.totalorder %s32, %s34
      %p38 = scmp.eq.s32.totalorder %s12, 0
      %p39 = por %p37, %p38
      %p40 = scmp.ne.s32.totalorder %s32, %s34
      %p41 = scmp.eq.s32.totalorder %s17, 1
      %p42 = por %p40, %p41
      %p43 = scmp.ne.s32.totalorder %s34, %s35
      %p44 = scmp.eq.s32.totalorder %s17, 0
      %p45 = por %p43, %p44
      %p46 = scmp.ne.s32.totalorder %s34, %s35
      %p47 = scmp.eq.s32.totalorder %s18, 1
      %p48 = por %p46, %p47
      %p50 = scmp.ne.s32.totalorder %s35, %s49
      %p51 = scmp.eq.s32.totalorder %s18, 0
      %p52 = por %p50, %p51
      %s53 = ssub.s32 %s19, %s31
      %s54 = ssub.s32 %s20, %s27
      %s55 = sor.u32 %s53, %s54
      %p56 = scmp.eq.s32.totalorder %s55, 0
      %s58 = sadd.s32 %s57, 1
      %s59 = scalar_select %p56, %s57, %s58
      %p62 = pneg %p56
      %p63 = scmp.eq.s32.totalorder %s12, 1
      %p64 = por %p62, %p63
      %p65 = scmp.ne.s32.totalorder %s57, %s60
      %p66 = scmp.eq.s32.totalorder %s12, 0
      %p67 = por %p65, %p66
      %p68 = scmp.ne.s32.totalorder %s57, %s60
      %p69 = scmp.eq.s32.totalorder %s17, 1
      %p70 = por %p68, %p69
      %p71 = scmp.ne.s32.totalorder %s60, %s61
      %p72 = scmp.eq.s32.totalorder %s17, 0
      %p73 = por %p71, %p72
      %p74 = scmp.ne.s32.totalorder %s60, %s61
      %p75 = scmp.eq.s32.totalorder %s18, 1
      %p76 = por %p74, %p75
      %p78 = scmp.ne.s32.totalorder %s61, %s77
      %p79 = scmp.eq.s32.totalorder %s18, 0
      %p80 = por %p78, %p79
      %s81 = ssub.s32 %s19, %s31
      %s82 = ssub.s32 %s20, %s27
      %s83 = sor.u32 %s81, %s82
      %p84 = scmp.eq.s32.totalorder %s83, 0
      %s86 = sadd.s32 %s85, 1
      %s87 = scalar_select %p84, %s85, %s86
      %p90 = pneg %p84
      %p91 = scmp.eq.s32.totalorder %s12, 1
      %p92 = por %p90, %p91
      %p93 = scmp.ne.s32.totalorder %s85, %s88
      %p94 = scmp.eq.s32.totalorder %s12, 0
      %p95 = por %p93, %p94
      %p96 = scmp.ne.s32.totalorder %s85, %s88
      %p97 = scmp.eq.s32.totalorder %s17, 1
      %p98 = por %p96, %p97
      %p99 = scmp.ne.s32.totalorder %s88, %s89
      %p100 = scmp.eq.s32.totalorder %s17, 0
      %p101 = por %p99, %p100
      %p102 = scmp.ne.s32.totalorder %s88, %s89
      %p103 = scmp.eq.s32.totalorder %s18, 1
      %p104 = por %p102, %p103
      %p106 = scmp.ne.s32.totalorder %s89, %s105
      %p107 = scmp.eq.s32.totalorder %s18, 0
      %p108 = por %p106, %p107
      %s110 = sadd.s32 %s109, 1
      %p113 = scmp.eq.s32.totalorder %s12, 1
      %p114 = scmp.ne.s32.totalorder %s109, %s111
      %p115 = scmp.eq.s32.totalorder %s12, 0
      %p116 = por %p114, %p115
      %p117 = scmp.ne.s32.totalorder %s109, %s111
      %p118 = scmp.eq.s32.totalorder %s17, 1
      %p119 = por %p117, %p118
      %p120 = scmp.ne.s32.totalorder %s111, %s112
      %p121 = scmp.eq.s32.totalorder %s17, 0
      %p122 = por %p120, %p121
      %p123 = scmp.ne.s32.totalorder %s111, %s112
      %p124 = scmp.eq.s32.totalorder %s18, 1
      %p125 = por %p123, %p124
      %p127 = scmp.ne.s32.totalorder %s112, %s126
      %p128 = scmp.eq.s32.totalorder %s18, 0
      %p129 = por %p127, %p128
      %s130 = ssub.s32 %s19, %s31
      %s131 = ssub.s32 %s20, %s27
      %s132 = sor.u32 %s130, %s131
      %p133 = scmp.eq.s32.totalorder %s132, 0
      %s135 = sadd.s32 %s134, 1
      %s136 = scalar_select %p133, %s134, %s135
      %p139 = pneg %p133
      %p140 = scmp.eq.s32.totalorder %s12, 1
      %p141 = por %p139, %p140
      %p142 = scmp.ne.s32.totalorder %s134, %s137
      %p143 = scmp.eq.s32.totalorder %s12, 0
      %p144 = por %p142, %p143
      %p145 = scmp.ne.s32.totalorder %s134, %s137
      %p146 = scmp.eq.s32.totalorder %s17, 1
      %p147 = por %p145, %p146
      %p148 = scmp.ne.s32.totalorder %s137, %s138
      %p149 = scmp.eq.s32.totalorder %s17, 0
      %p150 = por %p148, %p149
      %p151 = scmp.ne.s32.totalorder %s137, %s138
      %p152 = scmp.eq.s32.totalorder %s18, 1
      %p153 = por %p151, %p152
      %p155 = scmp.ne.s32.totalorder %s138, %s154
      %p156 = scmp.eq.s32.totalorder %s18, 0
      %p157 = por %p155, %p156
      %s158 = ssub.s32 %s19, %s31
      %p159 = scmp.eq.s32.totalorder %s158, 0
      %s161 = sadd.s32 %s160, 1
      %s162 = scalar_select %p159, %s160, %s161
      %p165 = pneg %p159
      %p166 = scmp.eq.s32.totalorder %s12, 1
      %p167 = por %p165, %p166
      %p168 = scmp.ne.s32.totalorder %s160, %s163
      %p169 = scmp.eq.s32.totalorder %s12, 0
      %p170 = por %p168, %p169
      %p171 = scmp.ne.s32.totalorder %s160, %s163
      %p172 = scmp.eq.s32.totalorder %s17, 1
      %p173 = por %p171, %p172
      %p174 = scmp.ne.s32.totalorder %s163, %s164
      %p175 = scmp.eq.s32.totalorder %s17, 0
      %p176 = por %p174, %p175
      %p177 = scmp.ne.s32.totalorder %s163, %s164
      %p178 = scmp.eq.s32.totalorder %s18, 1
      %p179 = por %p177, %p178
      %p181 = scmp.ne.s32.totalorder %s164, %s180
      %p182 = scmp.eq.s32.totalorder %s18, 0
      %p183 = por %p181, %p182
      %p184 = scmp.le.s32.totalorder 1, %s12
      %p185 = scmp.lt.s32.totalorder %s12, 3
      %p186 = pnand %p184, %p185
      %p187 = pneg %p186
      // Predicated region
      $region9: #{vat3d_loss.7} parent=5 // pred_check
        _
      $region10: #{vat3d_loss.7} parent=5 // pred_check_branch
        %189 = sbr.rel (%p186) target = $region12
      $region11: #{vat3d_loss.7} parent=5 // pred_region
        %s190 = ssub.s32 %s12, 1
        // Predicated region
        $region13: #{vat3d_loss.7} parent=11 // pred_check
          %p191 = pneg %p45
        $region14: #{vat3d_loss.7} parent=11 // pred_check_branch
          %193 = sbr.rel (%p191) target = $region16
        $region15: #{vat3d_loss.7} parent=11 // pred_region
          %195 = vsyncadd [#allocation4], 0
          %s197 = sshll.u32 %s0, 4
          %s198 = int_to_ptr.vmem [resolvable:$true] %s197
          %200 = dma.vmem_to_smem %s198, 16, [#allocation3], [#allocation4]
        $region16: #{vat3d_loss.7} parent=11 // pred_fallthru
          _
        // Predicated region
        $region17: #{vat3d_loss.7} parent=11 // pred_check
          %p201 = pneg %p122
        $region18: #{vat3d_loss.7} parent=11 // pred_check_branch
          %203 = sbr.rel (%p201) target = $region20
        $region19: #{vat3d_loss.7} parent=11 // pred_region
          _
        $region20: #{vat3d_loss.7} parent=11 // pred_fallthru
          _
      $region12: #{vat3d_loss.7} parent=5 // pred_fallthru
        _
      %p204 = scmp.lt.s32.totalorder %s12, 2
      // Predicated region
      $region21: #{vat3d_loss.7} parent=5 // pred_check
        %p205 = pneg %p204
      $region22: #{vat3d_loss.7} parent=5 // pred_check_branch
        %207 = sbr.rel (%p205) target = $region24
      $region23: #{vat3d_loss.7} parent=5 // pred_region
        // Predicated region
        $region25: #{vat3d_loss.7} parent=23 // pred_check
          %p208 = pneg %p67
        $region26: #{vat3d_loss.7} parent=23 // pred_check_branch
          %210 = sbr.rel (%p208) target = $region28
        $region27: #{vat3d_loss.7} parent=23 // pred_region
          %s211 = smul.u32 4, %s20
          %p212 = scmp.lt.s32.totalorder %s19, 1
          %s213 = scalar_select %p212, %s19, 1
          %p214 = scmp.lt.s32.totalorder %s211, 3
          %s215 = scalar_select %p214, %s211, 3
          %s216 = smul.addr %s213, 4
          %s217 = sadd.s32 %s215, %s216
          %s218 = smul.addr %s217, 8
          %s219 = scalar_lea.vmem %s1, %s218
          %s220 = smul.u32 4, %s20
        $region28: #{vat3d_loss.7} parent=23 // pred_fallthru
          _
        // Predicated region
        $region29: #{vat3d_loss.7} parent=23 // pred_check
          %p221 = pneg %p95
        $region30: #{vat3d_loss.7} parent=23 // pred_check_branch
          %223 = sbr.rel (%p221) target = $region32
        $region31: #{vat3d_loss.7} parent=23 // pred_region
          %s224 = smul.u32 4, %s20
          %p225 = scmp.lt.s32.totalorder %s19, 1
          %s226 = scalar_select %p225, %s19, 1
          %p227 = scmp.lt.s32.totalorder %s224, 3
          %s228 = scalar_select %p227, %s224, 3
          %s229 = smul.addr %s226, 4
          %s230 = sadd.s32 %s228, %s229
          %s231 = smul.addr %s230, 8
          %s232 = scalar_lea.vmem %s2, %s231
          %s233 = smul.u32 4, %s20
        $region32: #{vat3d_loss.7} parent=23 // pred_fallthru
          _
        // Predicated region
        $region33: #{vat3d_loss.7} parent=23 // pred_check
          %p234 = pneg %p144
        $region34: #{vat3d_loss.7} parent=23 // pred_check_branch
          %236 = sbr.rel (%p234) target = $region36
        $region35: #{vat3d_loss.7} parent=23 // pred_region
          %s237 = smul.u32 4, %s20
          %p238 = scmp.lt.s32.totalorder %s19, 1
          %s239 = scalar_select %p238, %s19, 1
          %p240 = scmp.lt.s32.totalorder %s237, 3
          %s241 = scalar_select %p240, %s237, 3
          %s242 = smul.addr %s239, 4
          %s243 = sadd.s32 %s241, %s242
          %s244 = smul.addr %s243, 8
          %s245 = scalar_lea.vmem %s4, %s244
          %s246 = smul.u32 4, %s20
        $region36: #{vat3d_loss.7} parent=23 // pred_fallthru
          _
      $region24: #{vat3d_loss.7} parent=5 // pred_fallthru
        _
      %p247 = scmp.le.s32.totalorder 1, %s12
      %p248 = scmp.lt.s32.totalorder %s12, 3
      %p249 = pnand %p247, %p248
      %p250 = pneg %p249
      // Predicated region
      $region37: #{vat3d_loss.7} parent=5 // pred_check
        _
      $region38: #{vat3d_loss.7} parent=5 // pred_check_branch
        %252 = sbr.rel (%p249) target = $region40
      $region39: #{vat3d_loss.7} parent=5 // pred_region
        %s253 = ssub.s32 %s12, 1
        // Predicated region
        $region41: #{vat3d_loss.7} parent=39 // pred_check
          %p254 = pneg %p45
        $region42: #{vat3d_loss.7} parent=39 // pred_check_branch
          %256 = sbr.rel (%p254) target = $region44
        $region43: #{vat3d_loss.7} parent=39 // pred_region
          %258 = dma.done [#allocation4], 16
        $region44: #{vat3d_loss.7} parent=39 // pred_fallthru
          _
        %259 = sfence
        %p260 = pneg %p45
        %p261 = pneg %p42
        %s262 = smul.u32 4, %s22
        %p263 = scmp.lt.s32.totalorder %s21, 1
        %s264 = scalar_select %p263, %s21, 1
        %p265 = scmp.lt.s32.totalorder %s262, 3
        %s266 = scalar_select %p265, %s262, 3
        %s267 = smul.addr %s264, 4
        %s268 = sadd.s32 %s266, %s267
        %s269 = smul.addr %s268, 8
        %s270 = scalar_lea.vmem %s1, %s269
        %p271 = pneg %p73
        %p272 = pneg %p70
        %s273 = smul.u32 4, %s22
        %p274 = scmp.lt.s32.totalorder %s21, 1
        %s275 = scalar_select %p274, %s21, 1
        %p276 = scmp.lt.s32.totalorder %s273, 3
        %s277 = scalar_select %p276, %s273, 3
        %s278 = smul.addr %s275, 4
        %s279 = sadd.s32 %s277, %s278
        %s280 = smul.addr %s279, 8
        %s281 = scalar_lea.vmem %s2, %s280
        %p282 = pneg %p101
        %p283 = pneg %p98
        %p284 = pneg %p122
        %p285 = pneg %p119
        %s286 = smul.u32 4, %s22
        %p287 = scmp.lt.s32.totalorder %s21, 1
        %s288 = scalar_select %p287, %s21, 1
        %p289 = scmp.lt.s32.totalorder %s286, 3
        %s290 = scalar_select %p289, %s286, 3
        %s291 = smul.addr %s288, 4
        %s292 = sadd.s32 %s290, %s291
        %s293 = smul.addr %s292, 8
        %s294 = scalar_lea.vmem %s4, %s293
        %p295 = pneg %p150
        %p296 = pneg %p147
        %p297 = pneg %p176
        %p298 = pneg %p173
        %p299 = scmp.lt.s32.totalorder %s21, 1
        %s300 = scalar_select %p299, %s21, 1
        %s301 = smul.addr %s300, 8
        %s302 = scalar_lea.vmem %s5, %s301
        %s303 = smul.u32 4, %s22
        %p304 = scmp.lt.s32.totalorder %s21, 1
        %s305 = scalar_select %p304, %s21, 1
        %p306 = scmp.lt.s32.totalorder %s303, 3
        %s307 = scalar_select %p306, %s303, 3
        %s308 = smul.addr %s305, 4
        %s309 = sadd.s32 %s307, %s308
        %s310 = smul.addr %s309, 8
        %s311 = scalar_lea.vmem %s1, %s310
        %s312 = smul.u32 4, %s22
        %s313 = smul.u32 4, %s22
        %p314 = scmp.lt.s32.totalorder %s21, 1
        %s315 = scalar_select %p314, %s21, 1
        %p316 = scmp.lt.s32.totalorder %s313, 3
        %s317 = scalar_select %p316, %s313, 3
        %s318 = smul.addr %s315, 4
        %s319 = sadd.s32 %s317, %s318
        %s320 = smul.addr %s319, 8
        %s321 = scalar_lea.vmem %s2, %s320
        %s322 = smul.u32 4, %s22
        %s323 = smul.u32 4, %s22
        %p324 = scmp.lt.s32.totalorder %s21, 1
        %s325 = scalar_select %p324, %s21, 1
        %p326 = scmp.lt.s32.totalorder %s323, 3
        %s327 = scalar_select %p326, %s323, 3
        %s328 = smul.addr %s325, 4
        %s329 = sadd.s32 %s327, %s328
        %s330 = smul.addr %s329, 8
        %s331 = scalar_lea.vmem %s4, %s330
        %s332 = smul.u32 4, %s22
        %p333 = scmp.lt.s32.totalorder %s21, 1
        %s334 = scalar_select %p333, %s21, 1
        %s335 = smul.addr %s334, 8
        %s336 = scalar_lea.vmem %s5, %s335
        %p337 = scmp.eq.s32.totalorder %s22, 0
        // Predicated region
        $region45: #{vat3d_loss.7} parent=39 // pred_check
          %p338 = pneg %p337
        $region46: #{vat3d_loss.7} parent=39 // pred_check_branch
          %340 = sbr.rel (%p338) target = $region48
        $region47: #{vat3d_loss.7} parent=39 // pred_region
          %s341 = scalar_lea.smem [#allocation2], 0
          %342 = sst [smem:[%s341]] 0.0
          %s343 = scalar_lea.smem [#allocation2], 1
          %344 = sst [smem:[%s343]] 0.0
          %s345 = scalar_lea.smem [#allocation2], 2
          %346 = sst [smem:[%s345]] 0.0
        $region48: #{vat3d_loss.7} parent=39 // pred_fallthru
          _
        %v347 = vld [vmem:[%s311] sm:$0xff]
        %v348 = vld [vmem:[%s311 + $0x8] sm:$0xff]
        %v349 = vld [vmem:[%s311 + $0x10] sm:$0xff]
        %v350 = vld [vmem:[%s311 + $0x18] sm:$0xff]
        %s351 = sld [smem:[#allocation3 + %s21]]
        %v352 = vld [vmem:[%s321] sm:$0xff]
        %v353 = vld [vmem:[%s321 + $0x8] sm:$0xff]
        %v354 = vld [vmem:[%s321 + $0x10] sm:$0xff]
        %v355 = vld [vmem:[%s321 + $0x18] sm:$0xff]
        %v356 = vstv %s351
        %v357 = vmul.f32 %v356, %v352
        %v358 = vmul.f32 %v356, %v353
        %v359 = vmul.f32 %v356, %v354
        %v360 = vmul.f32 %v356, %v355
        %v361 = vadd.f32 %v347, %v357
        %v362 = vadd.f32 %v348, %v358
        %v363 = vadd.f32 %v349, %v359
        %v364 = vadd.f32 %v350, %v360
        %v365 = vld [vmem:[%s3] sm:$0xff]
        %vm366 = vcmask 64512
        %v368 = vsel %vm366, %v365, 0
        %370 = vmatpush.msra.mxu0 0.0
        %371 = vmatpush.msra.mxu0 0.0
        %372 = vmatpush.msra.mxu0 0.0
        %373 = vmatpush.msra.mxu0 0.0
        %374 = vmatpush.msra.mxu0 0.0
        %375 = vmatpush.msra.mxu0 0.0
        %376 = vmatpush.msra.mxu0 0.0
        %377 = vmatpush.msra.mxu0 0.0
        %378 = vmatpush.msra.mxu0 0.0
        %379 = vmatpush.msra.mxu0 0.0
        %380 = vmatpush.msra.mxu0 0.0
        %381 = vmatpush.msra.mxu0 0.0
        %382 = vmatpush.msra.mxu0 0.0
        %383 = vmatpush.msra.mxu0 0.0
        %384 = vmatpush.msra.mxu0 0.0
        %385 = vmatpush.msra.mxu0 %v361
        %386 = vmatmul.f32.gmra.mxu0 %v368
        %v387 = vpop.f32.mrf.mxu0
        %v388 = vadd.f32 0.0, %v387
        %389 = vdwg.mxu0
        %390 = vmatpush.msra.mxu0 0.0
        %391 = vmatpush.msra.mxu0 0.0
        %392 = vmatpush.msra.mxu0 0.0
        %393 = vmatpush.msra.mxu0 0.0
        %394 = vmatpush.msra.mxu0 0.0
        %395 = vmatpush.msra.mxu0 0.0
        %396 = vmatpush.msra.mxu0 0.0
        %397 = vmatpush.msra.mxu0 0.0
        %398 = vmatpush.msra.mxu0 0.0
        %399 = vmatpush.msra.mxu0 0.0
        %400 = vmatpush.msra.mxu0 0.0
        %401 = vmatpush.msra.mxu0 0.0
        %402 = vmatpush.msra.mxu0 0.0
        %403 = vmatpush.msra.mxu0 0.0
        %404 = vmatpush.msra.mxu0 0.0
        %405 = vmatpush.msra.mxu0 %v362
        %406 = vmatmul.f32.gmra.mxu0 %v368
        %v407 = vpop.f32.mrf.mxu0
        %v408 = vadd.f32 0.0, %v407
        %409 = vdwg.mxu0
        %410 = vmatpush.msra.mxu0 0.0
        %411 = vmatpush.msra.mxu0 0.0
        %412 = vmatpush.msra.mxu0 0.0
        %413 = vmatpush.msra.mxu0 0.0
        %414 = vmatpush.msra.mxu0 0.0
        %415 = vmatpush.msra.mxu0 0.0
        %416 = vmatpush.msra.mxu0 0.0
        %417 = vmatpush.msra.mxu0 0.0
        %418 = vmatpush.msra.mxu0 0.0
        %419 = vmatpush.msra.mxu0 0.0
        %420 = vmatpush.msra.mxu0 0.0
        %421 = vmatpush.msra.mxu0 0.0
        %422 = vmatpush.msra.mxu0 0.0
        %423 = vmatpush.msra.mxu0 0.0
        %424 = vmatpush.msra.mxu0 0.0
        %425 = vmatpush.msra.mxu0 %v363
        %426 = vmatmul.f32.gmra.mxu0 %v368
        %v427 = vpop.f32.mrf.mxu0
        %v428 = vadd.f32 0.0, %v427
        %429 = vdwg.mxu0
        %430 = vmatpush.msra.mxu0 0.0
        %431 = vmatpush.msra.mxu0 0.0
        %432 = vmatpush.msra.mxu0 0.0
        %433 = vmatpush.msra.mxu0 0.0
        %434 = vmatpush.msra.mxu0 0.0
        %435 = vmatpush.msra.mxu0 0.0
        %436 = vmatpush.msra.mxu0 0.0
        %437 = vmatpush.msra.mxu0 0.0
        %438 = vmatpush.msra.mxu0 0.0
        %439 = vmatpush.msra.mxu0 0.0
        %440 = vmatpush.msra.mxu0 0.0
        %441 = vmatpush.msra.mxu0 0.0
        %442 = vmatpush.msra.mxu0 0.0
        %443 = vmatpush.msra.mxu0 0.0
        %444 = vmatpush.msra.mxu0 0.0
        %445 = vmatpush.msra.mxu0 %v364
        %446 = vmatmul.f32.gmra.mxu0 %v368
        %v447 = vpop.f32.mrf.mxu0
        %v448 = vadd.f32 0.0, %v447
        %449 = vdwg.mxu0
        %v450 = vrot.slane %v388, 4
        %v451 = vmax.f32 %v388, %v450
        %v452 = vrot.slane %v451, 2
        %v453 = vmax.f32 %v451, %v452
        %v454 = vrot.slane %v453, 1
        %v455 = vmax.f32 %v453, %v454
        %v456 = vrot.slane %v408, 4
        %v457 = vmax.f32 %v408, %v456
        %v458 = vrot.slane %v457, 2
        %v459 = vmax.f32 %v457, %v458
        %v460 = vrot.slane %v459, 1
        %v461 = vmax.f32 %v459, %v460
        %v462 = vrot.slane %v428, 4
        %v463 = vmax.f32 %v428, %v462
        %v464 = vrot.slane %v463, 2
        %v465 = vmax.f32 %v463, %v464
        %v466 = vrot.slane %v465, 1
        %v467 = vmax.f32 %v465, %v466
        %v468 = vrot.slane %v448, 4
        %v469 = vmax.f32 %v448, %v468
        %v470 = vrot.slane %v469, 2
        %v471 = vmax.f32 %v469, %v470
        %v472 = vrot.slane %v471, 1
        %v473 = vmax.f32 %v471, %v472
        %v474 = vsub.f32 %v388, %v455
        %v475 = vsub.f32 %v408, %v461
        %v476 = vsub.f32 %v428, %v467
        %v477 = vsub.f32 %v448, %v473
        %v478 = vmul.f32 %v474, 1.442695
        %v479 = vpow.pop %v478
        %v480 = vmul.f32 %v475, 1.442695
        %v481 = vpow.pop %v480
        %v482 = vmul.f32 %v476, 1.442695
        %v483 = vpow.pop %v482
        %v484 = vmul.f32 %v477, 1.442695
        %v485 = vpow.pop %v484
        %v486 = vrot.slane %v479, 4
        %v487 = vadd.f32 %v479, %v486
        %v488 = vrot.slane %v487, 2
        %v489 = vadd.f32 %v487, %v488
        %v490 = vrot.slane %v489, 1
        %v491 = vadd.f32 %v489, %v490
        %v492 = vrot.slane %v481, 4
        %v493 = vadd.f32 %v481, %v492
        %v494 = vrot.slane %v493, 2
        %v495 = vadd.f32 %v493, %v494
        %v496 = vrot.slane %v495, 1
        %v497 = vadd.f32 %v495, %v496
        %v498 = vrot.slane %v483, 4
        %v499 = vadd.f32 %v483, %v498
        %v500 = vrot.slane %v499, 2
        %v501 = vadd.f32 %v499, %v500
        %v502 = vrot.slane %v501, 1
        %v503 = vadd.f32 %v501, %v502
        %v504 = vrot.slane %v485, 4
        %v505 = vadd.f32 %v485, %v504
        %v506 = vrot.slane %v505, 2
        %v507 = vadd.f32 %v505, %v506
        %v508 = vrot.slane %v507, 1
        %v509 = vadd.f32 %v507, %v508
        %v510 = vrcp.pop %v491
        %v511 = vrcp.pop %v497
        %v512 = vrcp.pop %v503
        %v513 = vrcp.pop %v509
        %v514 = vmul.f32 %v479, %v510
        %v515 = vmul.f32 %v481, %v511
        %v516 = vmul.f32 %v483, %v512
        %v517 = vmul.f32 %v485, %v513
        %v518 = vld [vmem:[%s331] sm:$0xff]
        %v519 = vld [vmem:[%s331 + $0x8] sm:$0xff]
        %v520 = vld [vmem:[%s331 + $0x10] sm:$0xff]
        %v521 = vld [vmem:[%s331 + $0x18] sm:$0xff]
        %s522 = sld [smem:[#allocation2]]
        %v523 = vmul.f32 %v514, %v518
        %v524 = vmul.f32 %v515, %v519
        %v525 = vmul.f32 %v516, %v520
        %v526 = vmul.f32 %v517, %v521
        %v527 = vadd.f32 %v523, %v524
        %v528 = vadd.f32 %v527, %v525
        %v529 = vadd.f32 %v528, %v526
        %530 = vadd.xlane.f32.xlu0 %v529
        %v531 = vpop.xlane.xlu0 %530
        %v532 = vrot.slane %v531, 4
        %v533 = vadd.f32 %v531, %v532
        %v534 = vrot.slane %v533, 2
        %v535 = vadd.f32 %v533, %v534
        %v536 = vrot.slane %v535, 1
        %v537 = vadd.f32 %v535, %v536
        %s538 = vtos %v537
        %s539 = sadd.f32 %s522, %s538
        %s540 = scalar_lea.smem [#allocation2], 0
        %541 = sst [smem:[%s540]] %s539
        %s542 = sld [smem:[#allocation2 + $0x1]]
        %v543 = vadd.f32 %v514, %v515
        %v544 = vadd.f32 %v543, %v516
        %v545 = vadd.f32 %v544, %v517
        %546 = vadd.xlane.f32.xlu0 %v545
        %v547 = vpop.xlane.xlu0 %546
        %v548 = vrot.slane %v547, 4
        %v549 = vadd.f32 %v547, %v548
        %v550 = vrot.slane %v549, 2
        %v551 = vadd.f32 %v549, %v550
        %v552 = vrot.slane %v551, 1
        %v553 = vadd.f32 %v551, %v552
        %s554 = vtos %v553
        %s555 = sadd.f32 %s542, %s554
        %s556 = scalar_lea.smem [#allocation2], 1
        %557 = sst [smem:[%s556]] %s555
        %s558 = sld [smem:[#allocation2 + $0x2]]
        %v559 = vadd.f32 %v518, %v519
        %v560 = vadd.f32 %v559, %v520
        %v561 = vadd.f32 %v560, %v521
        %562 = vadd.xlane.f32.xlu0 %v561
        %v563 = vpop.xlane.xlu0 %562
        %v564 = vrot.slane %v563, 4
        %v565 = vadd.f32 %v563, %v564
        %v566 = vrot.slane %v565, 2
        %v567 = vadd.f32 %v565, %v566
        %v568 = vrot.slane %v567, 1
        %v569 = vadd.f32 %v567, %v568
        %s570 = vtos %v569
        %s571 = sadd.f32 %s558, %s570
        %s572 = scalar_lea.smem [#allocation2], 2
        %573 = sst [smem:[%s572]] %s571
        // Predicated region
        $region49: #{vat3d_loss.7} parent=39 // pred_check
          %p574 = pneg %p337
        $region50: #{vat3d_loss.7} parent=39 // pred_check_branch
          %576 = sbr.rel (%p574) target = $region52
        $region51: #{vat3d_loss.7} parent=39 // pred_region
          %v577 = vlaneseq
          %v578 = vand.u32 %v577, 127
          %vm579 = vcmp.eq.s32.totalorder %v578, 0
          %s580 = sld [smem:[#allocation2]]
          %vm581 = vcmp.eq.s32.totalorder %v578, 1
          %s582 = sld [smem:[#allocation2 + $0x1]]
          %vm583 = vcmp.eq.s32.totalorder %v578, 2
          %s584 = sld [smem:[#allocation2 + $0x2]]
          %v585 = vstv %s584
          %v586 = vsel %vm583, %v585, 0.0
          %v587 = vstv %s582
          %v588 = vsel %vm581, %v587, %v586
          %v589 = vstv %s580
          %v590 = vsel %vm579, %v589, %v588
          %591 = vst [vmem:[%s336] sm:$0xff] %v590
        $region52: #{vat3d_loss.7} parent=39 // pred_fallthru
          _
        %p592 = scmp.lt.s32.totalorder %s21, 1
        %s593 = scalar_select %p592, %s21, 1
        %s594 = smul.addr %s593, 8
        %s595 = scalar_lea.vmem %s5, %s594
        // Predicated region
        $region53: #{vat3d_loss.7} parent=39 // pred_check
          %p596 = pneg %p173
        $region54: #{vat3d_loss.7} parent=39 // pred_check_branch
          %598 = sbr.rel (%p596) target = $region56
        $region55: #{vat3d_loss.7} parent=39 // pred_region
          _
        $region56: #{vat3d_loss.7} parent=39 // pred_fallthru
          _
      $region40: #{vat3d_loss.7} parent=5 // pred_fallthru
        _
      %p599 = scmp.le.s32.totalorder 2, %s12
      // Predicated region
      $region57: #{vat3d_loss.7} parent=5 // pred_check
        %p600 = pneg %p599
      $region58: #{vat3d_loss.7} parent=5 // pred_check_branch
        %602 = sbr.rel (%p600) target = $region60
      $region59: #{vat3d_loss.7} parent=5 // pred_region
        %s603 = ssub.s32 %s12, 2
        // Predicated region
        $region61: #{vat3d_loss.7} parent=59 // pred_check
          %p604 = pneg %p179
        $region62: #{vat3d_loss.7} parent=59 // pred_check_branch
          %606 = sbr.rel (%p604) target = $region64
        $region63: #{vat3d_loss.7} parent=59 // pred_region
          %p607 = scmp.lt.s32.totalorder %s23, 1
          %s608 = scalar_select %p607, %s23, 1
          %s609 = smul.addr %s608, 8
          %s610 = scalar_lea.vmem %s5, %s609
        $region64: #{vat3d_loss.7} parent=59 // pred_fallthru
          _
      $region60: #{vat3d_loss.7} parent=5 // pred_fallthru
        _
    $region6: #{vat3d_loss.7} parent=1 // loop_footer
      %s16 = sadd.s32 1, %s12
    $region7: #{vat3d_loss.7} parent=1 // loop_footer_branch
      %11 = sbr.rel target = $region3
    $region8: #{vat3d_loss.7} parent=1 // loop_exit
      _
    %611 = vsyncpa [#allocation4], 1
    %s612 = scalar_lea.sflag [#allocation4], 1
    %613 = vsyncpa %s612, 1

</llo_original>
